<compile_context>
chip_gen: v5e
topology: v5e:2x2
jax: 0.10.0
libtpu: 0.0.40
codegen_flags: <defaults>
</compile_context>

<pallas_src>
import functools

import numpy as np
import jax
import jax.numpy as jnp
from jax.experimental import pallas as pl
from jax.experimental.pallas import tpu as pltpu

SIZES = (1, 2, 3, 6)
P_TOTAL = sum(s * s for s in SIZES)   # 50 pooled cells across all scales


def _round_up(x, m):
    return ((x + m - 1) // m) * m


def _pick_tile(hwp, target):
    """Largest multiple of 128 that divides hwp and is <= target (>=128)."""
    target = max(128, (target // 128) * 128)
    best, t = 128, 128
    while t <= min(hwp, target):
        if hwp % t == 0:
            best = t
        t += 128
    return best


# ----------------------------- Pallas kernel --------------------------------
def _ctx_kernel(feats_ref, interp_ref, pooled_ref, wfs_ref, bn_ref, wbo_ref,
                bb_ref, out_ref, *, C):
    feats = feats_ref[...]                                   # (C, T)   bf16

    # Shared feats contraction: [weight_net ; bottleneck-feats-half] @ feats
    # in ONE matmul (bf16 MXU, f32 accumulate).
    wf = jnp.dot(wfs_ref[...], feats, preferred_element_type=jnp.float32)
    wn_f = wf[:C]                                            # (C, T)   wn @ feats
    wb_f = wf[C:]                                            # (OUT, T) wb_feats @ feats

    # ONE interp matmul reconstructs all four bilinearly-upsampled scale maps
    # AND their weight_net images:
    #   rows [i*C,(i+1)*C)      -> ms_i
    #   rows [(4+i)*C,(5+i)*C)  -> wn @ ms_i
    both = jnp.dot(pooled_ref[...], interp_ref[...],
                   preferred_element_type=jnp.float32)       # (8C, T)  f32

    bn = bn_ref[...]                                         # (C, 1)
    num = None
    den = None
    for i in range(len(SIZES)):                              # unrolled; sublane-aligned slices
        ms_i = both[i * C:(i + 1) * C]
        logits_i = wn_f - both[(4 + i) * C:(5 + i) * C] + bn
        w_i = jax.nn.sigmoid(logits_i)                       # EUP
        num = ms_i * w_i if num is None else num + ms_i * w_i
        den = w_i if den is None else den + w_i

    # den = sum of 4 sigmoids > 0; tiny clamp guards the approx reciprocal
    # against f32 underflow for pathologically negative logits.
    den = jnp.maximum(den, 1e-20)
    overall = num * pl.reciprocal(den, approx=True)          # (C, T)  EUP slot

    out = (jnp.dot(wbo_ref[...], overall.astype(wbo_ref.dtype),
                   preferred_element_type=jnp.float32)
           + wb_f + bb_ref[...])
    out_ref[...] = jnp.maximum(out, 0.0).astype(out_ref.dtype)


def contextual_module_pallas(feats_r, interp, pooled, wfs, bn, wbo, bb, *,
                             tile_hw, out_dtype):
    """feats_r: (B, C, HWp), interp: (P, HWp), pooled: (B, 8C, P).
    Returns (B, OUT, HWp) in out_dtype."""
    B, C, HWp = feats_r.shape
    P = interp.shape[0]
    C8 = pooled.shape[1]
    OUT = wbo.shape[0]
    assert HWp % tile_hw == 0
    n_tiles = HWp // tile_hw

    # VMEM per step ~ (C*2 + P*2 + OUT*4)*tile_hw double-buffered plus the
    # (8C, tile) f32 intermediate: a few MiB at tile=1024 and C<=128.  For
    # production C (512) use tile_hw ~512-768 on v7x (32 MiB scoped default);
    # on v6e raise pltpu.CompilerParams(vmem_limit_bytes=...) and go to 2048.
    kernel = functools.partial(_ctx_kernel, C=C)
    return pl.pallas_call(
        kernel,
        out_shape=jax.ShapeDtypeStruct((B, OUT, HWp), out_dtype),
        grid_spec=pltpu.PrefetchScalarGridSpec(
            num_scalar_prefetch=0,
            grid=(n_tiles, B),   # batch innermost: interp tile resident across b
            in_specs=[
                pl.BlockSpec((None, C, tile_hw), lambda t, b: (b, 0, t)),  # feats (bf16)
                pl.BlockSpec((P, tile_hw), lambda t, b: (0, t)),           # interp weights
                pl.BlockSpec((None, C8, P), lambda t, b: (b, 0, 0)),       # [pooled ; wn@pooled]
                pl.BlockSpec((C + OUT, C), lambda t, b: (0, 0)),           # [wn ; wb_feats] stacked
                pl.BlockSpec((C, 1), lambda t, b: (0, 0)),                 # weight_net bias
                pl.BlockSpec((OUT, C), lambda t, b: (0, 0)),               # bottleneck overall-half
                pl.BlockSpec((OUT, 1), lambda t, b: (0, 0)),               # bottleneck bias
            ],
            out_specs=pl.BlockSpec((None, OUT, tile_hw), lambda t, b: (b, 0, t)),
        ),
        compiler_params=pltpu.CompilerParams(
            dimension_semantics=("parallel", "parallel")),
    )(feats_r, interp, pooled, wfs, bn, wbo, bb)


# ------------------------------ JAX glue -------------------------------------
def adaptive_avg_pool2d(x, s):
    """x: (B, C, H, W) -> (B, C, s, s), matching nn.AdaptiveAvgPool2d."""
    B, C, H, W = x.shape
    rows = []
    for i in range(s):
        h0, h1 = (i * H) // s, -(-((i + 1) * H) // s)
        cols = []
        for j in range(s):
            w0, w1 = (j * W) // s, -(-((j + 1) * W) // s)
            cols.append(x[:, :, h0:h1, w0:w1].mean(axis=(2, 3)))
        rows.append(jnp.stack(cols, axis=-1))
    return jnp.stack(rows, axis=-2)


def _src_index_np(out_size, in_size):
    """Bilinear source indices/fracs, align_corners=False."""
    scale = in_size / out_size
    coords = (np.arange(out_size, dtype=np.float64) + 0.5) * scale - 0.5
    coords = np.maximum(coords, 0.0)
    i0 = np.minimum(np.floor(coords).astype(np.int64), in_size - 1)
    i1 = np.minimum(i0 + 1, in_size - 1)
    frac = (coords - i0).astype(np.float32)
    return i0, i1, frac


@functools.lru_cache(maxsize=None)
def _interp_matrix_np(H, W, sizes=SIZES):
    """Dense bilinear-upsample operator (sum_i s_i^2, H*W) f32 (numpy, cached).
    ms_i[b, c, :] = pooled_conv_i[b, c].reshape(s_i^2) @ interp[block_i]."""
    blocks = []
    for s in sizes:
        y0, y1, fy = _src_index_np(H, s)
        x0, x1, fx = _src_index_np(W, s)
        wy = np.zeros((s, H), np.float32)
        wy[y0, np.arange(H)] += (1.0 - fy)
        wy[y1, np.arange(H)] += fy
        wx = np.zeros((s, W), np.float32)
        wx[x0, np.arange(W)] += (1.0 - fx)
        wx[x1, np.arange(W)] += fx
        w = wy[:, None, :, None] * wx[None, :, None, :]      # (s, s, H, W)
        blocks.append(w.reshape(s * s, H * W))
    return np.concatenate(blocks, axis=0)                    # (P_TOTAL, H*W)


def pack_params(params, weight_dtype=jnp.bfloat16):
    """Pack per-model weight operands once (hoisted out of the forward path)."""
    C = params["weight_net_w"].shape[0]
    wn = params["weight_net_w"].astype(jnp.float32)
    wb = params["bottleneck_w"].astype(jnp.float32)
    OUT = wb.shape[0]
    return {
        "scale_w": [w.astype(jnp.float32) for w in params["scale_w"]],
        "wn": wn,                                              # for pooled pre-mult
        "wfs": jnp.concatenate([wn, wb[:, C:]], axis=0).astype(weight_dtype),  # (C+OUT, C)
        "wbo": wb[:, :C].astype(weight_dtype),                 # (OUT, C)
        "bn": params["weight_net_b"].reshape(C, 1).astype(jnp.float32),
        "bb": params["bottleneck_b"].reshape(OUT, 1).astype(jnp.float32),
    }


def contextual_module_forward(feats, packed, *, tile_hw=1024,
                              stream_dtype=jnp.bfloat16, out_dtype=jnp.float32):
    """feats: (B, C, H, W) NCHW float32 -> (B, OUT, H, W) in out_dtype."""
    B, C, H, W = feats.shape
    HW = H * W
    OUT = packed["wbo"].shape[0]
    P_pad = _round_up(P_TOTAL, 8)

    HWp = _round_up(HW, 128)               # lane alignment only
    tile_hw = _pick_tile(HWp, tile_hw)
    n_pad = HWp - HW

    # ---- tiny glue: adaptive pools + 1x1 scale convs + weight_net pre-mult,
    #      packed block-diagonally into a (B, 8C, P_pad) operand.
    pooled = jnp.zeros((B, 8 * C, P_pad), jnp.float32)
    off = 0
    for i, (s, w_scale) in enumerate(zip(SIZES, packed["scale_w"])):
        p = adaptive_avg_pool2d(feats, s)                             # (B, C, s, s)
        conv = jnp.einsum("oc,bcij->boij", w_scale, p).reshape(B, C, s * s)
        wnconv = jnp.einsum("oc,bci->boi", packed["wn"], conv)        # wn @ conv
        pooled = pooled.at[:, i * C:(i + 1) * C, off:off + s * s].set(conv)
        pooled = pooled.at[:, (4 + i) * C:(5 + i) * C, off:off + s * s].set(wnconv)
        off += s * s
    pooled = pooled.astype(stream_dtype)

    # Bilinear-upsample operator: cached numpy build, constant under jit.
    interp = jnp.asarray(_interp_matrix_np(H, W))                     # (50, HW) f32
    interp = jnp.pad(interp, ((0, P_pad - P_TOTAL), (0, n_pad))).astype(stream_dtype)

    # feats in channels-major NC(HW) layout; cast BEFORE the (<=127 col) pad.
    feats_r = feats.reshape(B, C, HW).astype(stream_dtype)
    if n_pad:
        feats_r = jnp.pad(feats_r, ((0, 0), (0, 0), (0, n_pad)))

    out_r = contextual_module_pallas(
        feats_r, interp, pooled, packed["wfs"], packed["bn"], packed["wbo"],
        packed["bb"], tile_hw=tile_hw, out_dtype=out_dtype)
    if n_pad:
        out_r = out_r[:, :, :HW]
    return out_r.reshape(B, OUT, H, W)                                # NCHW


# ---------------- Pure-JAX reference (same math, no Pallas) -------------------
def _src_index(out_size, in_size):
    scale = in_size / out_size
    coords = (jnp.arange(out_size, dtype=jnp.float32) + 0.5) * scale - 0.5
    coords = jnp.maximum(coords, 0.0)
    i0 = jnp.minimum(jnp.floor(coords).astype(jnp.int32), in_size - 1)
    frac = coords - i0.astype(jnp.float32)
    i1 = jnp.minimum(i0 + 1, in_size - 1)
    return i0, i1, frac


def upsample_bilinear(x, H, W):
    B, C, h_in, w_in = x.shape
    y0, y1, fy = _src_index(H, h_in)
    x0, x1, fx = _src_index(W, w_in)
    top = x[:, :, y0, :]
    bot = x[:, :, y1, :]
    rows = top * (1.0 - fy)[None, None, :, None] + bot * fy[None, None, :, None]
    left = rows[:, :, :, x0]
    right = rows[:, :, :, x1]
    return left * (1.0 - fx) + right * fx


def reference_forward(feats, params):
    B, C, H, W = feats.shape
    multi_scales = []
    for s, w_scale in zip(SIZES, params["scale_w"]):
        pooled = adaptive_avg_pool2d(feats, s)
        conv = jnp.einsum("oc,bcij->boij", w_scale, pooled)
        multi_scales.append(upsample_bilinear(conv, H, W))
    weights = []
    for m in multi_scales:
        d = feats - m
        wgt = jnp.einsum("oc,bchw->bohw", params["weight_net_w"], d) \
              + params["weight_net_b"][None, :, None, None]
        weights.append(jax.nn.sigmoid(wgt))
    num = sum(m * w for m, w in zip(multi_scales, weights))
    den = sum(weights)
    overall = num / den
    cat = jnp.concatenate([overall, feats], axis=1)                   # (B, 2C, H, W)
    out = jnp.einsum("oc,bchw->bohw", params["bottleneck_w"], cat) \
          + params["bottleneck_b"][None, :, None, None]
    return jnp.maximum(out, 0.0)


# ------------------------------- main ----------------------------------------
if __name__ == "__main__":
    B, C, H, W = 2, 32, 16, 16
    OUT = 64

    key = jax.random.PRNGKey(0)
    keys = jax.random.split(key, 8)

    # Pre-round params/feats to bf16-representable values so the kernel's bf16
    # weight/feats streaming introduces no input-quantization error vs. the
    # f32 reference (residual error: bf16 interp/pooled rounding, overall->bf16
    # cast before the bottleneck matmul, approx reciprocal, summation order).
    def rnd(k, shape, gain):
        x = gain * jax.random.normal(k, shape, jnp.float32)
        return x.astype(jnp.bfloat16).astype(jnp.float32)

    params = {
        # 4 scale convs: Conv2d(C, C, 1, bias=False) -> weight (C, C)
        "scale_w": [rnd(keys[i], (C, C), 0.1) for i in range(4)],
        # weight_net: Conv2d(C, C, 1) with bias
        "weight_net_w": rnd(keys[4], (C, C), 0.1),
        "weight_net_b": rnd(keys[5], (C,), 0.05),
        # bottleneck: Conv2d(2C, OUT, 1) with bias
        "bottleneck_w": rnd(keys[6], (OUT, 2 * C), 0.1),
        "bottleneck_b": rnd(keys[7], (OUT,), 0.05),
    }

    feats = jax.random.normal(jax.random.PRNGKey(42), (B, C, H, W), jnp.float32)
    feats = feats.astype(jnp.bfloat16).astype(jnp.float32)

    packed = pack_params(params)           # hoisted once-per-model weight packing
    fwd = jax.jit(lambda f, p: contextual_module_forward(f, p))
    out = jax.block_until_ready(fwd(feats, packed))
    assert out.shape == (B, OUT, H, W), out.shape

    ref = jax.block_until_ready(reference_forward(feats, params))
    err = float(jnp.max(jnp.abs(out - ref)))
    # Tolerance covers bf16 streaming of the interp/pooled operands, the
    # overall->bf16 cast, the EUP approx-reciprocal and accumulation order.
    assert jnp.allclose(out, ref, rtol=5e-3, atol=5e-3), err

    print("KERNEL_OK")
</pallas_src>

<mosaic_0001>
module attributes {stable_mosaic.version = 11 : i64} {
  func.func @_ctx_kernel(%arg0: i32, %arg1: i32, %arg2: memref<1x32x256xbf16, #tpu.memory_space<vmem>>, %arg3: memref<56x256xbf16, #tpu.memory_space<vmem>>, %arg4: memref<1x256x56xbf16, #tpu.memory_space<vmem>>, %arg5: memref<96x32xbf16, #tpu.memory_space<vmem>>, %arg6: memref<32x1xf32, #tpu.memory_space<vmem>>, %arg7: memref<64x32xbf16, #tpu.memory_space<vmem>>, %arg8: memref<64x1xf32, #tpu.memory_space<vmem>>, %arg9: memref<1x64x256xf32, #tpu.memory_space<vmem>>) attributes {dimension_semantics = [#tpu.dimension_semantics<parallel>, #tpu.dimension_semantics<parallel>], iteration_bounds = array<i64: 1, 2>, scalar_prefetch = 0 : i64, scratch_operands = 0 : i64, tpu.core_type = #tpu.core_type<tc>, window_params = [{transform_indices = @transform_0, window_bounds = array<i64: 1, 32, 256>}, {transform_indices = @transform_1, window_bounds = array<i64: 56, 256>}, {transform_indices = @transform_2, window_bounds = array<i64: 1, 256, 56>}, {pipeline_mode = #tpu.pipeline_mode<synchronous>, transform_indices = @transform_3, window_bounds = array<i64: 96, 32>}, {pipeline_mode = #tpu.pipeline_mode<synchronous>, transform_indices = @transform_4, window_bounds = array<i64: 32, 1>}, {pipeline_mode = #tpu.pipeline_mode<synchronous>, transform_indices = @transform_5, window_bounds = array<i64: 64, 32>}, {pipeline_mode = #tpu.pipeline_mode<synchronous>, transform_indices = @transform_6, window_bounds = array<i64: 64, 1>}, {transform_indices = @transform_7, window_bounds = array<i64: 1, 64, 256>}]} {
    %c0 = arith.constant 0 : index
    %c0_0 = arith.constant 0 : index
    %c0_1 = arith.constant 0 : index
    %0 = vector.load %arg2[%c0, %c0_0, %c0_1] : memref<1x32x256xbf16, #tpu.memory_space<vmem>>, vector<1x32x256xbf16>
    %1 = vector.shape_cast %0 : vector<1x32x256xbf16> to vector<32x256xbf16>
    %c0_2 = arith.constant 0 : index
    %c0_3 = arith.constant 0 : index
    %2 = vector.load %arg5[%c0_2, %c0_3] : memref<96x32xbf16, #tpu.memory_space<vmem>>, vector<96x32xbf16>
    %cst = arith.constant dense<0.000000e+00> : vector<96x256xf32>
    %3 = tpu.matmul %2, %1, %cst {dimension_numbers = #tpu.dot_dimension_numbers<[1], [0], [0], [1], [0, 0, 1, 1], [], []>} : vector<96x32xbf16>, vector<32x256xbf16>, vector<96x256xf32> -> vector<96x256xf32>
    %4 = vector.extract_strided_slice %3 {offsets = [0, 0], sizes = [32, 256], strides = [1, 1]} : vector<96x256xf32> to vector<32x256xf32>
    %5 = vector.extract_strided_slice %3 {offsets = [32, 0], sizes = [64, 256], strides = [1, 1]} : vector<96x256xf32> to vector<64x256xf32>
    %c0_4 = arith.constant 0 : index
    %c0_5 = arith.constant 0 : index
    %c0_6 = arith.constant 0 : index
    %6 = vector.load %arg4[%c0_4, %c0_5, %c0_6] : memref<1x256x56xbf16, #tpu.memory_space<vmem>>, vector<1x256x56xbf16>
    %7 = vector.shape_cast %6 : vector<1x256x56xbf16> to vector<256x56xbf16>
    %c0_7 = arith.constant 0 : index
    %c0_8 = arith.constant 0 : index
    %8 = vector.load %arg3[%c0_7, %c0_8] : memref<56x256xbf16, #tpu.memory_space<vmem>>, vector<56x256xbf16>
    %cst_9 = arith.constant dense<0.000000e+00> : vector<256x256xf32>
    %9 = tpu.matmul %7, %8, %cst_9 {dimension_numbers = #tpu.dot_dimension_numbers<[1], [0], [0], [1], [0, 0, 1, 1], [], []>} : vector<256x56xbf16>, vector<56x256xbf16>, vector<256x256xf32> -> vector<256x256xf32>
    %c0_10 = arith.constant 0 : index
    %c0_11 = arith.constant 0 : index
    %10 = vector.load %arg6[%c0_10, %c0_11] : memref<32x1xf32, #tpu.memory_space<vmem>>, vector<32x1xf32>
    %11 = vector.extract_strided_slice %9 {offsets = [0, 0], sizes = [32, 256], strides = [1, 1]} : vector<256x256xf32> to vector<32x256xf32>
    %12 = vector.extract_strided_slice %9 {offsets = [128, 0], sizes = [32, 256], strides = [1, 1]} : vector<256x256xf32> to vector<32x256xf32>
    %13 = arith.subf %4, %12 : vector<32x256xf32>
    %14 = vector.broadcast %10 : vector<32x1xf32> to vector<32x256xf32>
    %15 = arith.addf %13, %14 : vector<32x256xf32>
    %16 = arith.negf %15 : vector<32x256xf32>
    %17 = math.exp %16 : vector<32x256xf32>
    %cst_12 = arith.constant 1.000000e+00 : f32
    %18 = vector.broadcast %cst_12 : f32 to vector<32x256xf32>
    %19 = arith.addf %18, %17 : vector<32x256xf32>
    %20 = arith.divf %18, %19 : vector<32x256xf32>
    %21 = arith.mulf %11, %20 : vector<32x256xf32>
    %22 = vector.extract_strided_slice %9 {offsets = [32, 0], sizes = [32, 256], strides = [1, 1]} : vector<256x256xf32> to vector<32x256xf32>
    %23 = vector.extract_strided_slice %9 {offsets = [160, 0], sizes = [32, 256], strides = [1, 1]} : vector<256x256xf32> to vector<32x256xf32>
    %24 = arith.subf %4, %23 : vector<32x256xf32>
    %25 = vector.broadcast %10 : vector<32x1xf32> to vector<32x256xf32>
    %26 = arith.addf %24, %25 : vector<32x256xf32>
    %27 = arith.negf %26 : vector<32x256xf32>
    %28 = math.exp %27 : vector<32x256xf32>
    %cst_13 = arith.constant 1.000000e+00 : f32
    %29 = vector.broadcast %cst_13 : f32 to vector<32x256xf32>
    %30 = arith.addf %29, %28 : vector<32x256xf32>
    %31 = arith.divf %29, %30 : vector<32x256xf32>
    %32 = arith.mulf %22, %31 : vector<32x256xf32>
    %33 = arith.addf %21, %32 : vector<32x256xf32>
    %34 = arith.addf %20, %31 : vector<32x256xf32>
    %35 = vector.extract_strided_slice %9 {offsets = [64, 0], sizes = [32, 256], strides = [1, 1]} : vector<256x256xf32> to vector<32x256xf32>
    %36 = vector.extract_strided_slice %9 {offsets = [192, 0], sizes = [32, 256], strides = [1, 1]} : vector<256x256xf32> to vector<32x256xf32>
    %37 = arith.subf %4, %36 : vector<32x256xf32>
    %38 = vector.broadcast %10 : vector<32x1xf32> to vector<32x256xf32>
    %39 = arith.addf %37, %38 : vector<32x256xf32>
    %40 = arith.negf %39 : vector<32x256xf32>
    %41 = math.exp %40 : vector<32x256xf32>
    %cst_14 = arith.constant 1.000000e+00 : f32
    %42 = vector.broadcast %cst_14 : f32 to vector<32x256xf32>
    %43 = arith.addf %42, %41 : vector<32x256xf32>
    %44 = arith.divf %42, %43 : vector<32x256xf32>
    %45 = arith.mulf %35, %44 : vector<32x256xf32>
    %46 = arith.addf %33, %45 : vector<32x256xf32>
    %47 = arith.addf %34, %44 : vector<32x256xf32>
    %48 = vector.extract_strided_slice %9 {offsets = [96, 0], sizes = [32, 256], strides = [1, 1]} : vector<256x256xf32> to vector<32x256xf32>
    %49 = vector.extract_strided_slice %9 {offsets = [224, 0], sizes = [32, 256], strides = [1, 1]} : vector<256x256xf32> to vector<32x256xf32>
    %50 = arith.subf %4, %49 : vector<32x256xf32>
    %51 = vector.broadcast %10 : vector<32x1xf32> to vector<32x256xf32>
    %52 = arith.addf %50, %51 : vector<32x256xf32>
    %53 = arith.negf %52 : vector<32x256xf32>
    %54 = math.exp %53 : vector<32x256xf32>
    %cst_15 = arith.constant 1.000000e+00 : f32
    %55 = vector.broadcast %cst_15 : f32 to vector<32x256xf32>
    %56 = arith.addf %55, %54 : vector<32x256xf32>
    %57 = arith.divf %55, %56 : vector<32x256xf32>
    %58 = arith.mulf %48, %57 : vector<32x256xf32>
    %59 = arith.addf %46, %58 : vector<32x256xf32>
    %60 = arith.addf %47, %57 : vector<32x256xf32>
    %cst_16 = arith.constant 9.99999968E-21 : f32
    %61 = vector.broadcast %cst_16 : f32 to vector<32x256xf32>
    %62 = arith.maximumf %60, %61 : vector<32x256xf32>
    %63 = tpu.reciprocal %62 {approx = true} : vector<32x256xf32> -> vector<32x256xf32>
    %64 = arith.mulf %59, %63 : vector<32x256xf32>
    %c0_17 = arith.constant 0 : index
    %c0_18 = arith.constant 0 : index
    %65 = vector.load %arg7[%c0_17, %c0_18] : memref<64x32xbf16, #tpu.memory_space<vmem>>, vector<64x32xbf16>
    %66 = arith.truncf %64 : vector<32x256xf32> to vector<32x256xbf16>
    %cst_19 = arith.constant dense<0.000000e+00> : vector<64x256xf32>
    %67 = tpu.matmul %65, %66, %cst_19 {dimension_numbers = #tpu.dot_dimension_numbers<[1], [0], [0], [1], [0, 0, 1, 1], [], []>} : vector<64x32xbf16>, vector<32x256xbf16>, vector<64x256xf32> -> vector<64x256xf32>
    %68 = arith.addf %67, %5 : vector<64x256xf32>
    %c0_20 = arith.constant 0 : index
    %c0_21 = arith.constant 0 : index
    %69 = vector.load %arg8[%c0_20, %c0_21] : memref<64x1xf32, #tpu.memory_space<vmem>>, vector<64x1xf32>
    %70 = vector.broadcast %69 : vector<64x1xf32> to vector<64x256xf32>
    %71 = arith.addf %68, %70 : vector<64x256xf32>
    %cst_22 = arith.constant 0.000000e+00 : f32
    %72 = vector.broadcast %cst_22 : f32 to vector<64x256xf32>
    %73 = arith.maximumf %71, %72 : vector<64x256xf32>
    %c0_23 = arith.constant 0 : index
    %c0_24 = arith.constant 0 : index
    %c0_25 = arith.constant 0 : index
    %74 = vector.load %arg9[%c0_23, %c0_24, %c0_25] : memref<1x64x256xf32, #tpu.memory_space<vmem>>, vector<1x64x256xf32>
    %75 = vector.shape_cast %74 : vector<1x64x256xf32> to vector<64x256xf32>
    %76 = vector.shape_cast %73 : vector<64x256xf32> to vector<1x64x256xf32>
    tpu.vector_store %arg9[%c0_23, %c0_24, %c0_25], %76 {strides = array<i32>} : memref<1x64x256xf32, #tpu.memory_space<vmem>>, vector<1x64x256xf32>,
    return
  }
  func.func @transform_0(%arg0: i32, %arg1: i32) -> (i32, i32, i32) {
    %c0_i32 = arith.constant 0 : i32
    %c0_i32_0 = arith.constant 0 : i32
    return %arg1, %c0_i32, %arg0 : i32, i32, i32
  }
  func.func @transform_1(%arg0: i32, %arg1: i32) -> (i32, i32) {
    %c0_i32 = arith.constant 0 : i32
    %c0_i32_0 = arith.constant 0 : i32
    return %c0_i32, %arg0 : i32, i32
  }
  func.func @transform_2(%arg0: i32, %arg1: i32) -> (i32, i32, i32) {
    %c0_i32 = arith.constant 0 : i32
    %c0_i32_0 = arith.constant 0 : i32
    %c0_i32_1 = arith.constant 0 : i32
    return %arg1, %c0_i32, %c0_i32_0 : i32, i32, i32
  }
  func.func @transform_3(%arg0: i32, %arg1: i32) -> (i32, i32) {
    %c0_i32 = arith.constant 0 : i32
    %c0_i32_0 = arith.constant 0 : i32
    %c0_i32_1 = arith.constant 0 : i32
    return %c0_i32, %c0_i32_0 : i32, i32
  }
  func.func @transform_4(%arg0: i32, %arg1: i32) -> (i32, i32) {
    %c0_i32 = arith.constant 0 : i32
    %c0_i32_0 = arith.constant 0 : i32
    %c0_i32_1 = arith.constant 0 : i32
    return %c0_i32, %c0_i32_0 : i32, i32
  }
  func.func @transform_5(%arg0: i32, %arg1: i32) -> (i32, i32) {
    %c0_i32 = arith.constant 0 : i32
    %c0_i32_0 = arith.constant 0 : i32
    %c0_i32_1 = arith.constant 0 : i32
    return %c0_i32, %c0_i32_0 : i32, i32
  }
  func.func @transform_6(%arg0: i32, %arg1: i32) -> (i32, i32) {
    %c0_i32 = arith.constant 0 : i32
    %c0_i32_0 = arith.constant 0 : i32
    %c0_i32_1 = arith.constant 0 : i32
    return %c0_i32, %c0_i32_0 : i32, i32
  }
  func.func @transform_7(%arg0: i32, %arg1: i32) -> (i32, i32, i32) {
    %c0_i32 = arith.constant 0 : i32
    %c0_i32_0 = arith.constant 0 : i32
    return %arg1, %c0_i32, %arg0 : i32, i32, i32
  }
}

</mosaic_0001>

<llo_original>
// kernel: _lambda_.1
$region0: #{_lambda_.1}
  #allocation0 [shape = 'u32[]', space=smem, size = 0x4, offset = 0x4, fixed_abs, tag = 'smem constant byte address 0x4 - core index']
  #allocation1 [shape = 'u32[72,128]{1,0:T(1,128)}', space=vmem, size = 0x9000, scoped, tag = 'internal scratch']
  %s0 = inlined_call_operand.vmem [shape: bf16[2,32,256], index: 0, kind: input, shape index: {}]
  %s1 = inlined_call_operand.vmem [shape: bf16[56,256], index: 1, kind: input, shape index: {}]
  %s2 = inlined_call_operand.vmem [shape: bf16[2,256,56], index: 2, kind: input, shape index: {}]
  %s3 = inlined_call_operand.vmem [shape: bf16[96,32], index: 3, kind: input, shape index: {}]
  %s4 = inlined_call_operand.vmem [shape: f32[32,1], index: 4, kind: input, shape index: {}]
  %s5 = inlined_call_operand.vmem [shape: bf16[64,32], index: 5, kind: input, shape index: {}]
  %s6 = inlined_call_operand.vmem [shape: f32[64,1], index: 6, kind: input, shape index: {}]
  %s7 = inlined_call_operand.vmem [shape: f32[2,64,256], index: 7, kind: output, shape index: {}]
  %s8 = sld [smem:[#allocation0]]
  $region61: #{_lambda_.1} parent=0
    _
  %s10 = ssub.s32 1, %s8
  %s11 = scalar_select 0, %s10, %s8
  loop: start=0, step=1, limit=4
  $region2: #{_lambda_.1} parent=0 // loop_pre_header
    _
  $region3: #{_lambda_.1} parent=0 // loop_header
    %s13 = sphi 0, %s17
    %p14 = scmp.ge.s32.totalorder %s13, 4
    %s20 = sphi 0, %s32
    %s21 = sphi 0, %s28
    %s22 = sphi 0, %s20
    %s23 = sphi 0, %s21
    %s24 = sphi 0, %s22
    %s25 = sphi 0, %s23
    %s37 = sphi 0, %s39
    %s40 = sphi 0, %s37
    %s41 = sphi 0, %s40
    %s57 = sphi 0, %s41
    %s63 = sphi 0, %s65
    %s66 = sphi 0, %s63
    %s67 = sphi 0, %s66
    %s83 = sphi 0, %s67
    %s89 = sphi 0, %s91
    %s92 = sphi 0, %s89
    %s93 = sphi 0, %s92
    %s109 = sphi 0, %s93
    %s113 = sphi 0, %s113
    %s115 = sphi 0, %s113
    %s116 = sphi 0, %s115
    %s130 = sphi 0, %s116
    %s134 = sphi 0, %s134
    %s136 = sphi 0, %s134
    %s137 = sphi 0, %s136
    %s151 = sphi 0, %s137
    %s155 = sphi 0, %s155
    %s157 = sphi 0, %s155
    %s158 = sphi 0, %s157
    %s172 = sphi 0, %s158
    %s176 = sphi 0, %s176
    %s178 = sphi 0, %s176
    %s179 = sphi 0, %s178
    %s193 = sphi 0, %s179
    %s201 = sphi 0, %s203
    %s204 = sphi 0, %s201
    %s205 = sphi 0, %s204
    %s221 = sphi 0, %s205
  $region4: #{_lambda_.1} parent=0 // loop_header_branch
    %16 = sbr.rel (%p14) target = $region8
  $region5: #{_lambda_.1} parent=0 // loop_body
    %s18 = ssub.s32 %s13, 1
    %s19 = ssub.s32 %s13, 2
    %s26 = sadd.s32 1, %s21
    %p27 = scmp.ge.s32.totalorder %s26, 2
    %s28 = scalar_select %p27, 0, %s26
    %s29 = sadd.s32 1, %s20
    %s30 = scalar_select %p27, %s29, %s20
    %p31 = scmp.ge.s32.totalorder %s30, 1
    %s32 = scalar_select %p31, 0, %s30
    %s33 = ssub.s32 %s21, %s28
    %s34 = ssub.s32 %s20, %s32
    %s35 = sor.u32 %s33, %s34
    %p36 = scmp.eq.s32.totalorder %s35, 0
    %s38 = sadd.s32 %s37, 1
    %s39 = scalar_select %p36, %s37, %s38
    %p42 = pneg %p36
    %p43 = scmp.eq.s32.totalorder %s13, 1
    %p44 = por %p42, %p43
    %p45 = scmp.ne.s32.totalorder %s37, %s40
    %p46 = scmp.eq.s32.totalorder %s13, 0
    %p47 = por %p45, %p46
    %p48 = scmp.ne.s32.totalorder %s37, %s40
    %p49 = scmp.eq.s32.totalorder %s18, 1
    %p50 = por %p48, %p49
    %p51 = scmp.ne.s32.totalorder %s40, %s41
    %p52 = scmp.eq.s32.totalorder %s18, 0
    %p53 = por %p51, %p52
    %p54 = scmp.ne.s32.totalorder %s40, %s41
    %p55 = scmp.eq.s32.totalorder %s19, 1
    %p56 = por %p54, %p55
    %p58 = scmp.ne.s32.totalorder %s41, %s57
    %p59 = scmp.eq.s32.totalorder %s19, 0
    %p60 = por %p58, %p59
    %s61 = ssub.s32 %s20, %s32
    %p62 = scmp.eq.s32.totalorder %s61, 0
    %s64 = sadd.s32 %s63, 1
    %s65 = scalar_select %p62, %s63, %s64
    %p68 = pneg %p62
    %p69 = scmp.eq.s32.totalorder %s13, 1
    %p70 = por %p68, %p69
    %p71 = scmp.ne.s32.totalorder %s63, %s66
    %p72 = scmp.eq.s32.totalorder %s13, 0
    %p73 = por %p71, %p72
    %p74 = scmp.ne.s32.totalorder %s63, %s66
    %p75 = scmp.eq.s32.totalorder %s18, 1
    %p76 = por %p74, %p75
    %p77 = scmp.ne.s32.totalorder %s66, %s67
    %p78 = scmp.eq.s32.totalorder %s18, 0
    %p79 = por %p77, %p78
    %p80 = scmp.ne.s32.totalorder %s66, %s67
    %p81 = scmp.eq.s32.totalorder %s19, 1
    %p82 = por %p80, %p81
    %p84 = scmp.ne.s32.totalorder %s67, %s83
    %p85 = scmp.eq.s32.totalorder %s19, 0
    %p86 = por %p84, %p85
    %s87 = ssub.s32 %s21, %s28
    %p88 = scmp.eq.s32.totalorder %s87, 0
    %s90 = sadd.s32 %s89, 1
    %s91 = scalar_select %p88, %s89, %s90
    %p94 = pneg %p88
    %p95 = scmp.eq.s32.totalorder %s13, 1
    %p96 = por %p94, %p95
    %p97 = scmp.ne.s32.totalorder %s89, %s92
    %p98 = scmp.eq.s32.totalorder %s13, 0
    %p99 = por %p97, %p98
    %p100 = scmp.ne.s32.totalorder %s89, %s92
    %p101 = scmp.eq.s32.totalorder %s18, 1
    %p102 = por %p100, %p101
    %p103 = scmp.ne.s32.totalorder %s92, %s93
    %p104 = scmp.eq.s32.totalorder %s18, 0
    %p105 = por %p103, %p104
    %p106 = scmp.ne.s32.totalorder %s92, %s93
    %p107 = scmp.eq.s32.totalorder %s19, 1
    %p108 = por %p106, %p107
    %p110 = scmp.ne.s32.totalorder %s93, %s109
    %p111 = scmp.eq.s32.totalorder %s19, 0
    %p112 = por %p110, %p111
    %s114 = sadd.s32 %s113, 1
    %p117 = scmp.eq.s32.totalorder %s13, 1
    %p118 = scmp.ne.s32.totalorder %s113, %s115
    %p119 = scmp.eq.s32.totalorder %s13, 0
    %p120 = por %p118, %p119
    %p121 = scmp.ne.s32.totalorder %s113, %s115
    %p122 = scmp.eq.s32.totalorder %s18, 1
    %p123 = por %p121, %p122
    %p124 = scmp.ne.s32.totalorder %s115, %s116
    %p125 = scmp.eq.s32.totalorder %s18, 0
    %p126 = por %p124, %p125
    %p127 = scmp.ne.s32.totalorder %s115, %s116
    %p128 = scmp.eq.s32.totalorder %s19, 1
    %p129 = por %p127, %p128
    %p131 = scmp.ne.s32.totalorder %s116, %s130
    %p132 = scmp.eq.s32.totalorder %s19, 0
    %p133 = por %p131, %p132
    %s135 = sadd.s32 %s134, 1
    %p138 = scmp.eq.s32.totalorder %s13, 1
    %p139 = scmp.ne.s32.totalorder %s134, %s136
    %p140 = scmp.eq.s32.totalorder %s13, 0
    %p141 = por %p139, %p140
    %p142 = scmp.ne.s32.totalorder %s134, %s136
    %p143 = scmp.eq.s32.totalorder %s18, 1
    %p144 = por %p142, %p143
    %p145 = scmp.ne.s32.totalorder %s136, %s137
    %p146 = scmp.eq.s32.totalorder %s18, 0
    %p147 = por %p145, %p146
    %p148 = scmp.ne.s32.totalorder %s136, %s137
    %p149 = scmp.eq.s32.totalorder %s19, 1
    %p150 = por %p148, %p149
    %p152 = scmp.ne.s32.totalorder %s137, %s151
    %p153 = scmp.eq.s32.totalorder %s19, 0
    %p154 = por %p152, %p153
    %s156 = sadd.s32 %s155, 1
    %p159 = scmp.eq.s32.totalorder %s13, 1
    %p160 = scmp.ne.s32.totalorder %s155, %s157
    %p161 = scmp.eq.s32.totalorder %s13, 0
    %p162 = por %p160, %p161
    %p163 = scmp.ne.s32.totalorder %s155, %s157
    %p164 = scmp.eq.s32.totalorder %s18, 1
    %p165 = por %p163, %p164
    %p166 = scmp.ne.s32.totalorder %s157, %s158
    %p167 = scmp.eq.s32.totalorder %s18, 0
    %p168 = por %p166, %p167
    %p169 = scmp.ne.s32.totalorder %s157, %s158
    %p170 = scmp.eq.s32.totalorder %s19, 1
    %p171 = por %p169, %p170
    %p173 = scmp.ne.s32.totalorder %s158, %s172
    %p174 = scmp.eq.s32.totalorder %s19, 0
    %p175 = por %p173, %p174
    %s177 = sadd.s32 %s176, 1
    %p180 = scmp.eq.s32.totalorder %s13, 1
    %p181 = scmp.ne.s32.totalorder %s176, %s178
    %p182 = scmp.eq.s32.totalorder %s13, 0
    %p183 = por %p181, %p182
    %p184 = scmp.ne.s32.totalorder %s176, %s178
    %p185 = scmp.eq.s32.totalorder %s18, 1
    %p186 = por %p184, %p185
    %p187 = scmp.ne.s32.totalorder %s178, %s179
    %p188 = scmp.eq.s32.totalorder %s18, 0
    %p189 = por %p187, %p188
    %p190 = scmp.ne.s32.totalorder %s178, %s179
    %p191 = scmp.eq.s32.totalorder %s19, 1
    %p192 = por %p190, %p191
    %p194 = scmp.ne.s32.totalorder %s179, %s193
    %p195 = scmp.eq.s32.totalorder %s19, 0
    %p196 = por %p194, %p195
    %s197 = ssub.s32 %s21, %s28
    %s198 = ssub.s32 %s20, %s32
    %s199 = sor.u32 %s197, %s198
    %p200 = scmp.eq.s32.totalorder %s199, 0
    %s202 = sadd.s32 %s201, 1
    %s203 = scalar_select %p200, %s201, %s202
    %p206 = pneg %p200
    %p207 = scmp.eq.s32.totalorder %s13, 1
    %p208 = por %p206, %p207
    %p209 = scmp.ne.s32.totalorder %s201, %s204
    %p210 = scmp.eq.s32.totalorder %s13, 0
    %p211 = por %p209, %p210
    %p212 = scmp.ne.s32.totalorder %s201, %s204
    %p213 = scmp.eq.s32.totalorder %s18, 1
    %p214 = por %p212, %p213
    %p215 = scmp.ne.s32.totalorder %s204, %s205
    %p216 = scmp.eq.s32.totalorder %s18, 0
    %p217 = por %p215, %p216
    %p218 = scmp.ne.s32.totalorder %s204, %s205
    %p219 = scmp.eq.s32.totalorder %s19, 1
    %p220 = por %p218, %p219
    %p222 = scmp.ne.s32.totalorder %s205, %s221
    %p223 = scmp.eq.s32.totalorder %s19, 0
    %p224 = por %p222, %p223
    %p225 = scmp.le.s32.totalorder 1, %s13
    %p226 = scmp.lt.s32.totalorder %s13, 3
    %p227 = pnand %p225, %p226
    %p228 = pneg %p227
    // Predicated region
    $region9: #{_lambda_.1} parent=5 // pred_check
      _
    $region10: #{_lambda_.1} parent=5 // pred_check_branch
      %230 = sbr.rel (%p227) target = $region12
    $region11: #{_lambda_.1} parent=5 // pred_region
      %s231 = ssub.s32 %s13, 1
      // Predicated region
      $region13: #{_lambda_.1} parent=11 // pred_check
        %p232 = pneg %p79
      $region14: #{_lambda_.1} parent=11 // pred_check_branch
        %234 = sbr.rel (%p232) target = $region16
      $region15: #{_lambda_.1} parent=11 // pred_region
        %s235 = smul.u32 2, %s22
        %p236 = scmp.lt.s32.totalorder %s235, 1
        %s237 = scalar_select %p236, %s235, 1
        %s238 = smul.addr %s237, 4
        %s239 = scalar_lea.vmem %s1, %s238
        %s240 = smul.u32 2, %s22
      $region16: #{_lambda_.1} parent=11 // pred_fallthru
        _
      // Predicated region
      $region17: #{_lambda_.1} parent=11 // pred_check
        %p241 = pneg %p126
      $region18: #{_lambda_.1} parent=11 // pred_check_branch
        %243 = sbr.rel (%p241) target = $region20
      $region19: #{_lambda_.1} parent=11 // pred_region
        _
      $region20: #{_lambda_.1} parent=11 // pred_fallthru
        _
      // Predicated region
      $region21: #{_lambda_.1} parent=11 // pred_check
        %p244 = pneg %p147
      $region22: #{_lambda_.1} parent=11 // pred_check_branch
        %246 = sbr.rel (%p244) target = $region24
      $region23: #{_lambda_.1} parent=11 // pred_region
        _
      $region24: #{_lambda_.1} parent=11 // pred_fallthru
        _
      // Predicated region
      $region25: #{_lambda_.1} parent=11 // pred_check
        %p247 = pneg %p168
      $region26: #{_lambda_.1} parent=11 // pred_check_branch
        %249 = sbr.rel (%p247) target = $region28
      $region27: #{_lambda_.1} parent=11 // pred_region
        _
      $region28: #{_lambda_.1} parent=11 // pred_fallthru
        _
      // Predicated region
      $region29: #{_lambda_.1} parent=11 // pred_check
        %p250 = pneg %p189
      $region30: #{_lambda_.1} parent=11 // pred_check_branch
        %252 = sbr.rel (%p250) target = $region32
      $region31: #{_lambda_.1} parent=11 // pred_region
        _
      $region32: #{_lambda_.1} parent=11 // pred_fallthru
        _
    $region12: #{_lambda_.1} parent=5 // pred_fallthru
      _
    %p253 = scmp.lt.s32.totalorder %s13, 2
    // Predicated region
    $region33: #{_lambda_.1} parent=5 // pred_check
      %p254 = pneg %p253
    $region34: #{_lambda_.1} parent=5 // pred_check_branch
      %256 = sbr.rel (%p254) target = $region36
    $region35: #{_lambda_.1} parent=5 // pred_region
      // Predicated region
      $region37: #{_lambda_.1} parent=35 // pred_check
        %p257 = pneg %p47
      $region38: #{_lambda_.1} parent=35 // pred_check_branch
        %259 = sbr.rel (%p257) target = $region40
      $region39: #{_lambda_.1} parent=35 // pred_region
        %s260 = smul.u32 2, %s20
        %p261 = scmp.lt.s32.totalorder %s21, 1
        %s262 = scalar_select %p261, %s21, 1
        %p263 = scmp.lt.s32.totalorder %s260, 1
        %s264 = scalar_select %p263, %s260, 1
        %s265 = smul.addr %s262, 8
        %s266 = sadd.s32 %s264, %s265
        %s267 = smul.addr %s266, 4
        %s268 = scalar_lea.vmem %s0, %s267
        %s269 = smul.u32 2, %s20
      $region40: #{_lambda_.1} parent=35 // pred_fallthru
        _
      // Predicated region
      $region41: #{_lambda_.1} parent=35 // pred_check
        %p270 = pneg %p99
      $region42: #{_lambda_.1} parent=35 // pred_check_branch
        %272 = sbr.rel (%p270) target = $region44
      $region43: #{_lambda_.1} parent=35 // pred_region
        %p273 = scmp.lt.s32.totalorder %s21, 1
        %s274 = scalar_select %p273, %s21, 1
        %s275 = smul.addr %s274, 32
        %s276 = smul.addr %s275, 4
        %s277 = scalar_lea.vmem %s2, %s276
      $region44: #{_lambda_.1} parent=35 // pred_fallthru
        _
    $region36: #{_lambda_.1} parent=5 // pred_fallthru
      _
    %p278 = scmp.le.s32.totalorder 1, %s13
    %p279 = scmp.lt.s32.totalorder %s13, 3
    %p280 = pnand %p278, %p279
    %p281 = pneg %p280
    // Predicated region
    $region45: #{_lambda_.1} parent=5 // pred_check
      _
    $region46: #{_lambda_.1} parent=5 // pred_check_branch
      %283 = sbr.rel (%p280) target = $region48
    $region47: #{_lambda_.1} parent=5 // pred_region
      %s284 = ssub.s32 %s13, 1
      %s285 = smul.u32 2, %s22
      %p286 = scmp.lt.s32.totalorder %s23, 1
      %s287 = scalar_select %p286, %s23, 1
      %p288 = scmp.lt.s32.totalorder %s285, 1
      %s289 = scalar_select %p288, %s285, 1
      %s290 = smul.addr %s287, 8
      %s291 = sadd.s32 %s289, %s290
      %s292 = smul.addr %s291, 4
      %s293 = scalar_lea.vmem %s0, %s292
      %p294 = pneg %p53
      %p295 = pneg %p50
      %s296 = smul.u32 2, %s22
      %p297 = scmp.lt.s32.totalorder %s296, 1
      %s298 = scalar_select %p297, %s296, 1
      %s299 = smul.addr %s298, 4
      %s300 = scalar_lea.vmem %s1, %s299
      %p301 = pneg %p79
      %p302 = pneg %p76
      %p303 = scmp.lt.s32.totalorder %s23, 1
      %s304 = scalar_select %p303, %s23, 1
      %s305 = smul.addr %s304, 32
      %s306 = smul.addr %s305, 4
      %s307 = scalar_lea.vmem %s2, %s306
      %p308 = pneg %p105
      %p309 = pneg %p102
      %p310 = pneg %p126
      %p311 = pneg %p123
      %p312 = pneg %p147
      %p313 = pneg %p144
      %p314 = pneg %p168
      %p315 = pneg %p165
      %p316 = pneg %p189
      %p317 = pneg %p186
      %p318 = pneg %p217
      %p319 = pneg %p214
      %s320 = smul.u32 2, %s22
      %p321 = scmp.lt.s32.totalorder %s23, 1
      %s322 = scalar_select %p321, %s23, 1
      %p323 = scmp.lt.s32.totalorder %s320, 1
      %s324 = scalar_select %p323, %s320, 1
      %s325 = smul.addr %s322, 16
      %s326 = sadd.s32 %s324, %s325
      %s327 = smul.addr %s326, 8
      %s328 = scalar_lea.vmem %s7, %s327
      %s329 = smul.u32 2, %s22
      %p330 = scmp.lt.s32.totalorder %s23, 1
      %s331 = scalar_select %p330, %s23, 1
      %p332 = scmp.lt.s32.totalorder %s329, 1
      %s333 = scalar_select %p332, %s329, 1
      %s334 = smul.addr %s331, 8
      %s335 = sadd.s32 %s333, %s334
      %s336 = smul.addr %s335, 4
      %s337 = scalar_lea.vmem %s0, %s336
      %s338 = smul.u32 2, %s22
      %s339 = smul.u32 2, %s22
      %p340 = scmp.lt.s32.totalorder %s339, 1
      %s341 = scalar_select %p340, %s339, 1
      %s342 = smul.addr %s341, 4
      %s343 = scalar_lea.vmem %s1, %s342
      %s344 = smul.u32 2, %s22
      %p345 = scmp.lt.s32.totalorder %s23, 1
      %s346 = scalar_select %p345, %s23, 1
      %s347 = smul.addr %s346, 32
      %s348 = smul.addr %s347, 4
      %s349 = scalar_lea.vmem %s2, %s348
      %s350 = smul.u32 2, %s22
      %p351 = scmp.lt.s32.totalorder %s23, 1
      %s352 = scalar_select %p351, %s23, 1
      %p353 = scmp.lt.s32.totalorder %s350, 1
      %s354 = scalar_select %p353, %s350, 1
      %s355 = smul.addr %s352, 16
      %s356 = sadd.s32 %s354, %s355
      %s357 = smul.addr %s356, 8
      %s358 = scalar_lea.vmem %s7, %s357
      %s359 = smul.u32 2, %s22
      %v361 = vld [vmem:[%s337] sm:$0xff]
      %v362 = vld [vmem:[%s337 + $0x8] sm:$0xff]
      %v363 = vld [vmem:[%s337 + $0x10] sm:$0xff]
      %v364 = vld [vmem:[%s337 + $0x18] sm:$0xff]
      %v365 = vld [vmem:[%s3] sm:$0xf]
      %v366 = vld [vmem:[%s3 + $0x4] sm:$0xf]
      %v367 = vld [vmem:[%s3 + $0x8] sm:$0xf]
      %v368 = vld [vmem:[%s3 + $0xc] sm:$0xf]
      %v369 = vld [vmem:[%s3 + $0x10] sm:$0xf]
      %v370 = vld [vmem:[%s3 + $0x14] sm:$0xf]
      %v371 = vld [vmem:[%s3 + $0x18] sm:$0xf]
      %v372 = vld [vmem:[%s3 + $0x1c] sm:$0xf]
      %v373 = vld [vmem:[%s3 + $0x20] sm:$0xf]
      %v374 = vld [vmem:[%s3 + $0x24] sm:$0xf]
      %v375 = vld [vmem:[%s3 + $0x28] sm:$0xf]
      %v376 = vld [vmem:[%s3 + $0x2c] sm:$0xf]
      %v389 = vunpack.c.l.b16 %v365
      %v390 = vunpack.c.l.b16 %v366
      %v391 = vunpack.c.l.b16 %v367
      %v392 = vunpack.c.l.b16 %v368
      %v393 = vunpack.c.l.b16 %v369
      %v394 = vunpack.c.l.b16 %v370
      %v395 = vunpack.c.l.b16 %v371
      %v396 = vunpack.c.l.b16 %v372
      %v397 = vunpack.c.l.b16 %v373
      %v398 = vunpack.c.l.b16 %v374
      %v399 = vunpack.c.l.b16 %v375
      %v400 = vunpack.c.l.b16 %v376
      %v401 = vpack.c.b16 %v390, %v389
      %v402 = vpack.c.b16 %v392, %v391
      %v403 = vpack.c.b16 %v394, %v393
      %v404 = vpack.c.b16 %v396, %v395
      %v405 = vpack.c.b16 %v398, %v397
      %v406 = vpack.c.b16 %v400, %v399
      %v411 = vunpack.c.l.b16 %v361
      %v412 = vunpack.c.h.b16 %v361
      %v413 = vunpack.c.l.b16 %v362
      %v414 = vunpack.c.h.b16 %v362
      %v415 = vunpack.c.l.b16 %v363
      %v416 = vunpack.c.h.b16 %v363
      %v417 = vunpack.c.l.b16 %v364
      %v418 = vunpack.c.h.b16 %v364
      %v419 = vpack.c.b16 %v413, %v411
      %v420 = vpack.c.b16 %v414, %v412
      %v421 = vpack.c.b16 %v417, %v415
      %v422 = vpack.c.b16 %v418, %v416
      %vm427 = vcmask 261120
      %v429 = vsel %vm427, %v401, 0
      %v432 = vsel %vm427, %v402, 0
      %v435 = vsel %vm427, %v403, 0
      %v438 = vsel %vm427, %v404, 0
      %v441 = vsel %vm427, %v405, 0
      %v444 = vsel %vm427, %v406, 0
      %446 = vmatpush.bf16.msra.mxu0 0
      %447 = vmatpush.bf16.msra.mxu0 0
      %448 = vmatpush.bf16.msra.mxu0 0
      %449 = vmatpush.bf16.msra.mxu0 0
      %450 = vmatpush.bf16.msra.mxu0 0
      %451 = vmatpush.bf16.msra.mxu0 0
      %452 = vmatpush.bf16.msra.mxu0 %v421
      %453 = vmatpush.bf16.msra.mxu0 %v419
      %454 = vmatmul.bf16.gmra.mxu0 %v429
      %v455 = vpop.f32.mrf.mxu0
      %v456 = vadd.f32 0.0, %v455
      %v457 = vpop.f32.mrf.mxu0
      %v458 = vadd.f32 0.0, %v457
      %459 = vmatmul.bf16.gmra.mxu0 %v432
      %v460 = vpop.f32.mrf.mxu0
      %v461 = vadd.f32 0.0, %v460
      %v462 = vpop.f32.mrf.mxu0
      %v463 = vadd.f32 0.0, %v462
      %464 = vmatmul.bf16.gmra.mxu0 %v435
      %v465 = vpop.f32.mrf.mxu0
      %v466 = vadd.f32 0.0, %v465
      %v467 = vpop.f32.mrf.mxu0
      %v468 = vadd.f32 0.0, %v467
      %469 = vmatmul.bf16.gmra.mxu0 %v438
      %v470 = vpop.f32.mrf.mxu0
      %v471 = vadd.f32 0.0, %v470
      %v472 = vpop.f32.mrf.mxu0
      %v473 = vadd.f32 0.0, %v472
      %474 = vmatmul.bf16.gmra.mxu0 %v441
      %v475 = vpop.f32.mrf.mxu0
      %v476 = vadd.f32 0.0, %v475
      %v477 = vpop.f32.mrf.mxu0
      %v478 = vadd.f32 0.0, %v477
      %479 = vmatmul.bf16.gmra.mxu0 %v444
      %v480 = vpop.f32.mrf.mxu0
      %v481 = vadd.f32 0.0, %v480
      %v482 = vpop.f32.mrf.mxu0
      %v483 = vadd.f32 0.0, %v482
      %484 = vdwg.mxu0
      %485 = vmatpush.bf16.msra.mxu0 0
      %486 = vmatpush.bf16.msra.mxu0 0
      %487 = vmatpush.bf16.msra.mxu0 0
      %488 = vmatpush.bf16.msra.mxu0 0
      %489 = vmatpush.bf16.msra.mxu0 0
      %490 = vmatpush.bf16.msra.mxu0 0
      %491 = vmatpush.bf16.msra.mxu0 %v422
      %492 = vmatpush.bf16.msra.mxu0 %v420
      %493 = vmatmul.bf16.gmra.mxu0 %v429
      %v494 = vpop.f32.mrf.mxu0
      %v495 = vadd.f32 0.0, %v494
      %v496 = vpop.f32.mrf.mxu0
      %v497 = vadd.f32 0.0, %v496
      %498 = vmatmul.bf16.gmra.mxu0 %v432
      %v499 = vpop.f32.mrf.mxu0
      %v500 = vadd.f32 0.0, %v499
      %v501 = vpop.f32.mrf.mxu0
      %v502 = vadd.f32 0.0, %v501
      %503 = vmatmul.bf16.gmra.mxu0 %v435
      %v504 = vpop.f32.mrf.mxu0
      %v505 = vadd.f32 0.0, %v504
      %v506 = vpop.f32.mrf.mxu0
      %v507 = vadd.f32 0.0, %v506
      %508 = vmatmul.bf16.gmra.mxu0 %v438
      %v509 = vpop.f32.mrf.mxu0
      %v510 = vadd.f32 0.0, %v509
      %v511 = vpop.f32.mrf.mxu0
      %v512 = vadd.f32 0.0, %v511
      %513 = vmatmul.bf16.gmra.mxu0 %v441
      %v514 = vpop.f32.mrf.mxu0
      %v515 = vadd.f32 0.0, %v514
      %v516 = vpop.f32.mrf.mxu0
      %v517 = vadd.f32 0.0, %v516
      %518 = vmatmul.bf16.gmra.mxu0 %v444
      %v519 = vpop.f32.mrf.mxu0
      %v520 = vadd.f32 0.0, %v519
      %v521 = vpop.f32.mrf.mxu0
      %v522 = vadd.f32 0.0, %v521
      %523 = vdwg.mxu0
      %v524 = vld [vmem:[%s349] sm:$0xf]
      %v525 = vld [vmem:[%s349 + $0x4] sm:$0xf]
      %v526 = vld [vmem:[%s349 + $0x8] sm:$0xf]
      %v527 = vld [vmem:[%s349 + $0xc] sm:$0xf]
      %v528 = vld [vmem:[%s349 + $0x10] sm:$0xf]
      %v529 = vld [vmem:[%s349 + $0x14] sm:$0xf]
      %v530 = vld [vmem:[%s349 + $0x18] sm:$0xf]
      %v531 = vld [vmem:[%s349 + $0x1c] sm:$0xf]
      %v532 = vld [vmem:[%s349 + $0x20] sm:$0xf]
      %v533 = vld [vmem:[%s349 + $0x24] sm:$0xf]
      %v534 = vld [vmem:[%s349 + $0x28] sm:$0xf]
      %v535 = vld [vmem:[%s349 + $0x2c] sm:$0xf]
      %v536 = vld [vmem:[%s349 + $0x30] sm:$0xf]
      %v537 = vld [vmem:[%s349 + $0x34] sm:$0xf]
      %v538 = vld [vmem:[%s349 + $0x38] sm:$0xf]
      %v539 = vld [vmem:[%s349 + $0x3c] sm:$0xf]
      %v540 = vld [vmem:[%s349 + $0x40] sm:$0xf]
      %v541 = vld [vmem:[%s349 + $0x44] sm:$0xf]
      %v542 = vld [vmem:[%s349 + $0x48] sm:$0xf]
      %v543 = vld [vmem:[%s349 + $0x4c] sm:$0xf]
      %v544 = vld [vmem:[%s349 + $0x50] sm:$0xf]
      %v545 = vld [vmem:[%s349 + $0x54] sm:$0xf]
      %v546 = vld [vmem:[%s349 + $0x58] sm:$0xf]
      %v547 = vld [vmem:[%s349 + $0x5c] sm:$0xf]
      %v548 = vld [vmem:[%s349 + $0x60] sm:$0xf]
      %v549 = vld [vmem:[%s349 + $0x64] sm:$0xf]
      %v550 = vld [vmem:[%s349 + $0x68] sm:$0xf]
      %v551 = vld [vmem:[%s349 + $0x6c] sm:$0xf]
      %v552 = vld [vmem:[%s349 + $0x70] sm:$0xf]
      %v553 = vld [vmem:[%s349 + $0x74] sm:$0xf]
      %v554 = vld [vmem:[%s349 + $0x78] sm:$0xf]
      %v555 = vld [vmem:[%s349 + $0x7c] sm:$0xf]
      %v556 = vld [vmem:[%s343] sm:$0xff]
      %v557 = vld [vmem:[%s343 + $0x8] sm:$0xff]
      %v558 = vld [vmem:[%s343 + $0x10] sm:$0xff]
      %v559 = vld [vmem:[%s343 + $0x18] sm:$0xff]
      %v560 = vld [vmem:[%s343 + $0x20] sm:$0xff]
      %v561 = vld [vmem:[%s343 + $0x28] sm:$0xff]
      %v562 = vld [vmem:[%s343 + $0x30] sm:$0xff]
      %v595 = vunpack.c.l.b16 %v524
      %v596 = vunpack.c.l.b16 %v525
      %v597 = vunpack.c.l.b16 %v526
      %v598 = vunpack.c.l.b16 %v527
      %v599 = vunpack.c.l.b16 %v528
      %v600 = vunpack.c.l.b16 %v529
      %v601 = vunpack.c.l.b16 %v530
      %v602 = vunpack.c.l.b16 %v531
      %v603 = vunpack.c.l.b16 %v532
      %v604 = vunpack.c.l.b16 %v533
      %v605 = vunpack.c.l.b16 %v534
      %v606 = vunpack.c.l.b16 %v535
      %v607 = vunpack.c.l.b16 %v536
      %v608 = vunpack.c.l.b16 %v537
      %v609 = vunpack.c.l.b16 %v538
      %v610 = vunpack.c.l.b16 %v539
      %v611 = vunpack.c.l.b16 %v540
      %v612 = vunpack.c.l.b16 %v541
      %v613 = vunpack.c.l.b16 %v542
      %v614 = vunpack.c.l.b16 %v543
      %v615 = vunpack.c.l.b16 %v544
      %v616 = vunpack.c.l.b16 %v545
      %v617 = vunpack.c.l.b16 %v546
      %v618 = vunpack.c.l.b16 %v547
      %v619 = vunpack.c.l.b16 %v548
      %v620 = vunpack.c.l.b16 %v549
      %v621 = vunpack.c.l.b16 %v550
      %v622 = vunpack.c.l.b16 %v551
      %v623 = vunpack.c.l.b16 %v552
      %v624 = vunpack.c.l.b16 %v553
      %v625 = vunpack.c.l.b16 %v554
      %v626 = vunpack.c.l.b16 %v555
      %v627 = vpack.c.b16 %v596, %v595
      %v628 = vpack.c.b16 %v598, %v597
      %v629 = vpack.c.b16 %v600, %v599
      %v630 = vpack.c.b16 %v602, %v601
      %v631 = vpack.c.b16 %v604, %v603
      %v632 = vpack.c.b16 %v606, %v605
      %v633 = vpack.c.b16 %v608, %v607
      %v634 = vpack.c.b16 %v610, %v609
      %v635 = vpack.c.b16 %v612, %v611
      %v636 = vpack.c.b16 %v614, %v613
      %v637 = vpack.c.b16 %v616, %v615
      %v638 = vpack.c.b16 %v618, %v617
      %v639 = vpack.c.b16 %v620, %v619
      %v640 = vpack.c.b16 %v622, %v621
      %v641 = vpack.c.b16 %v624, %v623
      %v642 = vpack.c.b16 %v626, %v625
      %v650 = vunpack.c.l.b16 %v556
      %v651 = vunpack.c.h.b16 %v556
      %v652 = vunpack.c.l.b16 %v557
      %v653 = vunpack.c.h.b16 %v557
      %v654 = vunpack.c.l.b16 %v558
      %v655 = vunpack.c.h.b16 %v558
      %v656 = vunpack.c.l.b16 %v559
      %v657 = vunpack.c.h.b16 %v559
      %v658 = vunpack.c.l.b16 %v560
      %v659 = vunpack.c.h.b16 %v560
      %v660 = vunpack.c.l.b16 %v561
      %v661 = vunpack.c.h.b16 %v561
      %v662 = vunpack.c.l.b16 %v562
      %v663 = vunpack.c.h.b16 %v562
      %v664 = vpack.c.b16 %v652, %v650
      %v665 = vpack.c.b16 %v653, %v651
      %v666 = vpack.c.b16 %v656, %v654
      %v667 = vpack.c.b16 %v657, %v655
      %v668 = vpack.c.b16 %v660, %v658
      %v669 = vpack.c.b16 %v661, %v659
      %v670 = vpack.c.b16 %v662, %v662
      %v671 = vpack.c.b16 %v663, %v663
      %vm678 = vcmask 457728
      %v680 = vsel %vm678, %v627, 0
      %v683 = vsel %vm678, %v628, 0
      %v686 = vsel %vm678, %v629, 0
      %v689 = vsel %vm678, %v630, 0
      %v692 = vsel %vm678, %v631, 0
      %v695 = vsel %vm678, %v632, 0
      %v698 = vsel %vm678, %v633, 0
      %v701 = vsel %vm678, %v634, 0
      %v704 = vsel %vm678, %v635, 0
      %v707 = vsel %vm678, %v636, 0
      %v710 = vsel %vm678, %v637, 0
      %v713 = vsel %vm678, %v638, 0
      %v716 = vsel %vm678, %v639, 0
      %v719 = vsel %vm678, %v640, 0
      %v722 = vsel %vm678, %v641, 0
      %v725 = vsel %vm678, %v642, 0
      %vm727 = vcmask 1043456
      %v729 = vsel %vm727, %v670, 0
      %v732 = vsel %vm727, %v671, 0
      %734 = vmatpush.bf16.msra.mxu0 0
      %735 = vmatpush.bf16.msra.mxu0 0
      %736 = vmatpush.bf16.msra.mxu0 0
      %737 = vmatpush.bf16.msra.mxu0 0
      %738 = vmatpush.bf16.msra.mxu0 %v729
      %739 = vmatpush.bf16.msra.mxu0 %v668
      %740 = vmatpush.bf16.msra.mxu0 %v666
      %741 = vmatpush.bf16.msra.mxu0 %v664
      %742 = vmatmul.bf16.gmra.mxu0 %v680
      %v743 = vpop.f32.mrf.mxu0
      %v744 = vadd.f32 0.0, %v743
      %v745 = vpop.f32.mrf.mxu0
      %v746 = vadd.f32 0.0, %v745
      %747 = vmatmul.bf16.gmra.mxu0 %v683
      %v748 = vpop.f32.mrf.mxu0
      %v749 = vadd.f32 0.0, %v748
      %v750 = vpop.f32.mrf.mxu0
      %v751 = vadd.f32 0.0, %v750
      %752 = vmatmul.bf16.gmra.mxu0 %v686
      %v753 = vpop.f32.mrf.mxu0
      %v754 = vadd.f32 0.0, %v753
      %v755 = vpop.f32.mrf.mxu0
      %v756 = vadd.f32 0.0, %v755
      %757 = vmatmul.bf16.gmra.mxu0 %v689
      %v758 = vpop.f32.mrf.mxu0
      %v759 = vadd.f32 0.0, %v758
      %v760 = vpop.f32.mrf.mxu0
      %v761 = vadd.f32 0.0, %v760
      %762 = vmatmul.bf16.gmra.mxu0 %v692
      %v763 = vpop.f32.mrf.mxu0
      %v764 = vadd.f32 0.0, %v763
      %v765 = vpop.f32.mrf.mxu0
      %v766 = vadd.f32 0.0, %v765
      %767 = vmatmul.bf16.gmra.mxu0 %v695
      %v768 = vpop.f32.mrf.mxu0
      %v769 = vadd.f32 0.0, %v768
      %v770 = vpop.f32.mrf.mxu0
      %v771 = vadd.f32 0.0, %v770
      %772 = vmatmul.bf16.gmra.mxu0 %v698
      %v773 = vpop.f32.mrf.mxu0
      %v774 = vadd.f32 0.0, %v773
      %v775 = vpop.f32.mrf.mxu0
      %v776 = vadd.f32 0.0, %v775
      %777 = vmatmul.bf16.gmra.mxu0 %v701
      %v778 = vpop.f32.mrf.mxu0
      %v779 = vadd.f32 0.0, %v778
      %v780 = vpop.f32.mrf.mxu0
      %v781 = vadd.f32 0.0, %v780
      %782 = vmatmul.bf16.gmra.mxu0 %v704
      %v783 = vpop.f32.mrf.mxu0
      %v784 = vadd.f32 0.0, %v783
      %v785 = vpop.f32.mrf.mxu0
      %v786 = vadd.f32 0.0, %v785
      %787 = vmatmul.bf16.gmra.mxu0 %v707
      %v788 = vpop.f32.mrf.mxu0
      %v789 = vadd.f32 0.0, %v788
      %v790 = vpop.f32.mrf.mxu0
      %v791 = vadd.f32 0.0, %v790
      %792 = vmatmul.bf16.gmra.mxu0 %v710
      %v793 = vpop.f32.mrf.mxu0
      %v794 = vadd.f32 0.0, %v793
      %v795 = vpop.f32.mrf.mxu0
      %v796 = vadd.f32 0.0, %v795
      %797 = vmatmul.bf16.gmra.mxu0 %v713
      %v798 = vpop.f32.mrf.mxu0
      %v799 = vadd.f32 0.0, %v798
      %v800 = vpop.f32.mrf.mxu0
      %v801 = vadd.f32 0.0, %v800
      %802 = vmatmul.bf16.gmra.mxu0 %v716
      %v803 = vpop.f32.mrf.mxu0
      %v804 = vadd.f32 0.0, %v803
      %v805 = vpop.f32.mrf.mxu0
      %v806 = vadd.f32 0.0, %v805
      %807 = vmatmul.bf16.gmra.mxu0 %v719
      %v808 = vpop.f32.mrf.mxu0
      %v809 = vadd.f32 0.0, %v808
      %v810 = vpop.f32.mrf.mxu0
      %v811 = vadd.f32 0.0, %v810
      %812 = vmatmul.bf16.gmra.mxu0 %v722
      %v813 = vpop.f32.mrf.mxu0
      %v814 = vadd.f32 0.0, %v813
      %v815 = vpop.f32.mrf.mxu0
      %v816 = vadd.f32 0.0, %v815
      %817 = vmatmul.bf16.gmra.mxu0 %v725
      %v818 = vpop.f32.mrf.mxu0
      %v819 = vadd.f32 0.0, %v818
      %v820 = vpop.f32.mrf.mxu0
      %v821 = vadd.f32 0.0, %v820
      %822 = vdwg.mxu0
      %823 = vmatpush.bf16.msra.mxu0 0
      %824 = vmatpush.bf16.msra.mxu0 0
      %825 = vmatpush.bf16.msra.mxu0 0
      %826 = vmatpush.bf16.msra.mxu0 0
      %827 = vmatpush.bf16.msra.mxu0 %v732
      %828 = vmatpush.bf16.msra.mxu0 %v669
      %829 = vmatpush.bf16.msra.mxu0 %v667
      %830 = vmatpush.bf16.msra.mxu0 %v665
      %831 = vmatmul.bf16.gmra.mxu0 %v680
      %v832 = vpop.f32.mrf.mxu0
      %v833 = vadd.f32 0.0, %v832
      %v834 = vpop.f32.mrf.mxu0
      %v835 = vadd.f32 0.0, %v834
      %836 = vmatmul.bf16.gmra.mxu0 %v683
      %v837 = vpop.f32.mrf.mxu0
      %v838 = vadd.f32 0.0, %v837
      %v839 = vpop.f32.mrf.mxu0
      %v840 = vadd.f32 0.0, %v839
      %841 = vmatmul.bf16.gmra.mxu0 %v686
      %v842 = vpop.f32.mrf.mxu0
      %v843 = vadd.f32 0.0, %v842
      %v844 = vpop.f32.mrf.mxu0
      %v845 = vadd.f32 0.0, %v844
      %846 = vmatmul.bf16.gmra.mxu0 %v689
      %v847 = vpop.f32.mrf.mxu0
      %v848 = vadd.f32 0.0, %v847
      %v849 = vpop.f32.mrf.mxu0
      %v850 = vadd.f32 0.0, %v849
      %851 = vmatmul.bf16.gmra.mxu0 %v692
      %v852 = vpop.f32.mrf.mxu0
      %v853 = vadd.f32 0.0, %v852
      %v854 = vpop.f32.mrf.mxu0
      %v855 = vadd.f32 0.0, %v854
      %856 = vmatmul.bf16.gmra.mxu0 %v695
      %v857 = vpop.f32.mrf.mxu0
      %v858 = vadd.f32 0.0, %v857
      %v859 = vpop.f32.mrf.mxu0
      %v860 = vadd.f32 0.0, %v859
      %861 = vmatmul.bf16.gmra.mxu0 %v698
      %v862 = vpop.f32.mrf.mxu0
      %v863 = vadd.f32 0.0, %v862
      %v864 = vpop.f32.mrf.mxu0
      %v865 = vadd.f32 0.0, %v864
      %866 = vmatmul.bf16.gmra.mxu0 %v701
      %v867 = vpop.f32.mrf.mxu0
      %v868 = vadd.f32 0.0, %v867
      %v869 = vpop.f32.mrf.mxu0
      %v870 = vadd.f32 0.0, %v869
      %871 = vmatmul.bf16.gmra.mxu0 %v704
      %v872 = vpop.f32.mrf.mxu0
      %v873 = vadd.f32 0.0, %v872
      %v874 = vpop.f32.mrf.mxu0
      %v875 = vadd.f32 0.0, %v874
      %876 = vmatmul.bf16.gmra.mxu0 %v707
      %v877 = vpop.f32.mrf.mxu0
      %v878 = vadd.f32 0.0, %v877
      %v879 = vpop.f32.mrf.mxu0
      %v880 = vadd.f32 0.0, %v879
      %881 = vmatmul.bf16.gmra.mxu0 %v710
      %v882 = vpop.f32.mrf.mxu0
      %v883 = vadd.f32 0.0, %v882
      %v884 = vpop.f32.mrf.mxu0
      %v885 = vadd.f32 0.0, %v884
      %886 = vmatmul.bf16.gmra.mxu0 %v713
      %v887 = vpop.f32.mrf.mxu0
      %v888 = vadd.f32 0.0, %v887
      %v889 = vpop.f32.mrf.mxu0
      %v890 = vadd.f32 0.0, %v889
      %891 = vmatmul.bf16.gmra.mxu0 %v716
      %v892 = vpop.f32.mrf.mxu0
      %v893 = vadd.f32 0.0, %v892
      %v894 = vpop.f32.mrf.mxu0
      %v895 = vadd.f32 0.0, %v894
      %896 = vmatmul.bf16.gmra.mxu0 %v719
      %v897 = vpop.f32.mrf.mxu0
      %v898 = vadd.f32 0.0, %v897
      %v899 = vpop.f32.mrf.mxu0
      %v900 = vadd.f32 0.0, %v899
      %901 = vmatmul.bf16.gmra.mxu0 %v722
      %v902 = vpop.f32.mrf.mxu0
      %v903 = vadd.f32 0.0, %v902
      %v904 = vpop.f32.mrf.mxu0
      %v905 = vadd.f32 0.0, %v904
      %906 = vmatmul.bf16.gmra.mxu0 %v725
      %v907 = vpop.f32.mrf.mxu0
      %v908 = vadd.f32 0.0, %v907
      %v909 = vpop.f32.mrf.mxu0
      %v910 = vadd.f32 0.0, %v909
      %911 = vdwg.mxu0
      %v912 = vld [vmem:[%s4] sm:$0xff]
      %v913 = vld [vmem:[%s4 + $0x8] sm:$0xff]
      %v914 = vld [vmem:[%s4 + $0x10] sm:$0xff]
      %v915 = vld [vmem:[%s4 + $0x18] sm:$0xff]
      %v916 = vsub.f32 %v456, %v784
      %v917 = vsub.f32 %v495, %v873
      %v918 = vsub.f32 %v458, %v786
      %v919 = vsub.f32 %v497, %v875
      %v920 = vsub.f32 %v461, %v789
      %v921 = vsub.f32 %v500, %v878
      %v922 = vsub.f32 %v463, %v791
      %v923 = vsub.f32 %v502, %v880
      %925 = vset.pattern.permute.xlu0 0
      %926 = vperm.xlu0 %925, %v912
      %v927 = vpop.permute.xlu0 %926
      %930 = vset.pattern.permute.xlu0 0
      %931 = vperm.xlu0 %930, %v913
      %v932 = vpop.permute.xlu0 %931
      %935 = vset.pattern.permute.xlu0 0
      %936 = vperm.xlu0 %935, %v914
      %v937 = vpop.permute.xlu0 %936
      %940 = vset.pattern.permute.xlu0 0
      %941 = vperm.xlu0 %940, %v915
      %v942 = vpop.permute.xlu0 %941
      %v944 = vadd.f32 %v916, %v927
      %v945 = vadd.f32 %v917, %v927
      %v946 = vadd.f32 %v918, %v932
      %v947 = vadd.f32 %v919, %v932
      %v948 = vadd.f32 %v920, %v937
      %v949 = vadd.f32 %v921, %v937
      %v950 = vadd.f32 %v922, %v942
      %v951 = vadd.f32 %v923, %v942
      %v952 = vxor.u32 %v944, 2147483648
      %v953 = vxor.u32 %v945, 2147483648
      %v954 = vxor.u32 %v946, 2147483648
      %v955 = vxor.u32 %v947, 2147483648
      %v956 = vxor.u32 %v948, 2147483648
      %v957 = vxor.u32 %v949, 2147483648
      %v958 = vxor.u32 %v950, 2147483648
      %v959 = vxor.u32 %v951, 2147483648
      %v960 = vmul.f32 %v952, 1.442695
      %v961 = vpow.pop %v960
      %v962 = vmul.f32 %v953, 1.442695
      %v963 = vpow.pop %v962
      %v964 = vmul.f32 %v954, 1.442695
      %v965 = vpow.pop %v964
      %v966 = vmul.f32 %v955, 1.442695
      %v967 = vpow.pop %v966
      %v968 = vmul.f32 %v956, 1.442695
      %v969 = vpow.pop %v968
      %v970 = vmul.f32 %v957, 1.442695
      %v971 = vpow.pop %v970
      %v972 = vmul.f32 %v958, 1.442695
      %v973 = vpow.pop %v972
      %v974 = vmul.f32 %v959, 1.442695
      %v975 = vpow.pop %v974
      %v976 = vadd.f32 %v961, 1.0
      %v977 = vadd.f32 %v963, 1.0
      %v978 = vadd.f32 %v965, 1.0
      %v979 = vadd.f32 %v967, 1.0
      %v980 = vadd.f32 %v969, 1.0
      %v981 = vadd.f32 %v971, 1.0
      %v982 = vadd.f32 %v973, 1.0
      %v983 = vadd.f32 %v975, 1.0
      %v984 = vrcp.pop %v976
      %v985 = vmul.f32 %v976, %v984
      %v986 = vsub.f32 1.0, %v985
      %v987 = vmul.f32 %v984, %v986
      %v988 = vadd.f32 %v984, %v987
      %vm989 = vweird.f32 %v976
      %vm990 = vweird.f32 %v984
      %vm991 = vmor %vm989, %vm990
      %v992 = vsel %vm991, %v984, %v988
      %v993 = vand.u32 2147483647, %v976
      %vm994 = vcmp.eq.f32.partialorder %v993, 8.507059e+37
      %v995 = vand.u32 %v976, 2147483648
      %v996 = vor.u32 1.1754944e-38, %v995
      %v997 = vsel %vm994, %v996, %v992
      %v998 = vmul.f32 1.0, %v997
      %v999 = vrcp.pop %v977
      %v1000 = vmul.f32 %v977, %v999
      %v1001 = vsub.f32 1.0, %v1000
      %v1002 = vmul.f32 %v999, %v1001
      %v1003 = vadd.f32 %v999, %v1002
      %vm1004 = vweird.f32 %v977
      %vm1005 = vweird.f32 %v999
      %vm1006 = vmor %vm1004, %vm1005
      %v1007 = vsel %vm1006, %v999, %v1003
      %v1008 = vand.u32 2147483647, %v977
      %vm1009 = vcmp.eq.f32.partialorder %v1008, 8.507059e+37
      %v1010 = vand.u32 %v977, 2147483648
      %v1011 = vor.u32 1.1754944e-38, %v1010
      %v1012 = vsel %vm1009, %v1011, %v1007
      %v1013 = vmul.f32 1.0, %v1012
      %v1014 = vrcp.pop %v978
      %v1015 = vmul.f32 %v978, %v1014
      %v1016 = vsub.f32 1.0, %v1015
      %v1017 = vmul.f32 %v1014, %v1016
      %v1018 = vadd.f32 %v1014, %v1017
      %vm1019 = vweird.f32 %v978
      %vm1020 = vweird.f32 %v1014
      %vm1021 = vmor %vm1019, %vm1020
      %v1022 = vsel %vm1021, %v1014, %v1018
      %v1023 = vand.u32 2147483647, %v978
      %vm1024 = vcmp.eq.f32.partialorder %v1023, 8.507059e+37
      %v1025 = vand.u32 %v978, 2147483648
      %v1026 = vor.u32 1.1754944e-38, %v1025
      %v1027 = vsel %vm1024, %v1026, %v1022
      %v1028 = vmul.f32 1.0, %v1027
      %v1029 = vrcp.pop %v979
      %v1030 = vmul.f32 %v979, %v1029
      %v1031 = vsub.f32 1.0, %v1030
      %v1032 = vmul.f32 %v1029, %v1031
      %v1033 = vadd.f32 %v1029, %v1032
      %vm1034 = vweird.f32 %v979
      %vm1035 = vweird.f32 %v1029
      %vm1036 = vmor %vm1034, %vm1035
      %v1037 = vsel %vm1036, %v1029, %v1033
      %v1038 = vand.u32 2147483647, %v979
      %vm1039 = vcmp.eq.f32.partialorder %v1038, 8.507059e+37
      %v1040 = vand.u32 %v979, 2147483648
      %v1041 = vor.u32 1.1754944e-38, %v1040
      %v1042 = vsel %vm1039, %v1041, %v1037
      %v1043 = vmul.f32 1.0, %v1042
      %v1044 = vrcp.pop %v980
      %v1045 = vmul.f32 %v980, %v1044
      %v1046 = vsub.f32 1.0, %v1045
      %v1047 = vmul.f32 %v1044, %v1046
      %v1048 = vadd.f32 %v1044, %v1047
      %vm1049 = vweird.f32 %v980
      %vm1050 = vweird.f32 %v1044
      %vm1051 = vmor %vm1049, %vm1050
      %v1052 = vsel %vm1051, %v1044, %v1048
      %v1053 = vand.u32 2147483647, %v980
      %vm1054 = vcmp.eq.f32.partialorder %v1053, 8.507059e+37
      %v1055 = vand.u32 %v980, 2147483648
      %v1056 = vor.u32 1.1754944e-38, %v1055
      %v1057 = vsel %vm1054, %v1056, %v1052
      %v1058 = vmul.f32 1.0, %v1057
      %v1059 = vrcp.pop %v981
      %v1060 = vmul.f32 %v981, %v1059
      %v1061 = vsub.f32 1.0, %v1060
      %v1062 = vmul.f32 %v1059, %v1061
      %v1063 = vadd.f32 %v1059, %v1062
      %vm1064 = vweird.f32 %v981
      %vm1065 = vweird.f32 %v1059
      %vm1066 = vmor %vm1064, %vm1065
      %v1067 = vsel %vm1066, %v1059, %v1063
      %v1068 = vand.u32 2147483647, %v981
      %vm1069 = vcmp.eq.f32.partialorder %v1068, 8.507059e+37
      %v1070 = vand.u32 %v981, 2147483648
      %v1071 = vor.u32 1.1754944e-38, %v1070
      %v1072 = vsel %vm1069, %v1071, %v1067
      %v1073 = vmul.f32 1.0, %v1072
      %v1074 = vrcp.pop %v982
      %v1075 = vmul.f32 %v982, %v1074
      %v1076 = vsub.f32 1.0, %v1075
      %v1077 = vmul.f32 %v1074, %v1076
      %v1078 = vadd.f32 %v1074, %v1077
      %vm1079 = vweird.f32 %v982
      %vm1080 = vweird.f32 %v1074
      %vm1081 = vmor %vm1079, %vm1080
      %v1082 = vsel %vm1081, %v1074, %v1078
      %v1083 = vand.u32 2147483647, %v982
      %vm1084 = vcmp.eq.f32.partialorder %v1083, 8.507059e+37
      %v1085 = vand.u32 %v982, 2147483648
      %v1086 = vor.u32 1.1754944e-38, %v1085
      %v1087 = vsel %vm1084, %v1086, %v1082
      %v1088 = vmul.f32 1.0, %v1087
      %v1089 = vrcp.pop %v983
      %v1090 = vmul.f32 %v983, %v1089
      %v1091 = vsub.f32 1.0, %v1090
      %v1092 = vmul.f32 %v1089, %v1091
      %v1093 = vadd.f32 %v1089, %v1092
      %vm1094 = vweird.f32 %v983
      %vm1095 = vweird.f32 %v1089
      %vm1096 = vmor %vm1094, %vm1095
      %v1097 = vsel %vm1096, %v1089, %v1093
      %v1098 = vand.u32 2147483647, %v983
      %vm1099 = vcmp.eq.f32.partialorder %v1098, 8.507059e+37
      %v1100 = vand.u32 %v983, 2147483648
      %v1101 = vor.u32 1.1754944e-38, %v1100
      %v1102 = vsel %vm1099, %v1101, %v1097
      %v1103 = vmul.f32 1.0, %v1102
      %v1104 = vmul.f32 %v744, %v998
      %v1105 = vmul.f32 %v833, %v1013
      %v1106 = vmul.f32 %v746, %v1028
      %v1107 = vmul.f32 %v835, %v1043
      %v1108 = vmul.f32 %v749, %v1058
      %v1109 = vmul.f32 %v838, %v1073
      %v1110 = vmul.f32 %v751, %v1088
      %v1111 = vmul.f32 %v840, %v1103
      %v1112 = vsub.f32 %v456, %v794
      %v1113 = vsub.f32 %v495, %v883
      %v1114 = vsub.f32 %v458, %v796
      %v1115 = vsub.f32 %v497, %v885
      %v1116 = vsub.f32 %v461, %v799
      %v1117 = vsub.f32 %v500, %v888
      %v1118 = vsub.f32 %v463, %v801
      %v1119 = vsub.f32 %v502, %v890
      %v1120 = vadd.f32 %v1112, %v927
      %v1121 = vadd.f32 %v1113, %v927
      %v1122 = vadd.f32 %v1114, %v932
      %v1123 = vadd.f32 %v1115, %v932
      %v1124 = vadd.f32 %v1116, %v937
      %v1125 = vadd.f32 %v1117, %v937
      %v1126 = vadd.f32 %v1118, %v942
      %v1127 = vadd.f32 %v1119, %v942
      %v1128 = vxor.u32 %v1120, 2147483648
      %v1129 = vxor.u32 %v1121, 2147483648
      %v1130 = vxor.u32 %v1122, 2147483648
      %v1131 = vxor.u32 %v1123, 2147483648
      %v1132 = vxor.u32 %v1124, 2147483648
      %v1133 = vxor.u32 %v1125, 2147483648
      %v1134 = vxor.u32 %v1126, 2147483648
      %v1135 = vxor.u32 %v1127, 2147483648
      %v1136 = vmul.f32 %v1128, 1.442695
      %v1137 = vpow.pop %v1136
      %v1138 = vmul.f32 %v1129, 1.442695
      %v1139 = vpow.pop %v1138
      %v1140 = vmul.f32 %v1130, 1.442695
      %v1141 = vpow.pop %v1140
      %v1142 = vmul.f32 %v1131, 1.442695
      %v1143 = vpow.pop %v1142
      %v1144 = vmul.f32 %v1132, 1.442695
      %v1145 = vpow.pop %v1144
      %v1146 = vmul.f32 %v1133, 1.442695
      %v1147 = vpow.pop %v1146
      %v1148 = vmul.f32 %v1134, 1.442695
      %v1149 = vpow.pop %v1148
      %v1150 = vmul.f32 %v1135, 1.442695
      %v1151 = vpow.pop %v1150
      %v1152 = vadd.f32 %v1137, 1.0
      %v1153 = vadd.f32 %v1139, 1.0
      %v1154 = vadd.f32 %v1141, 1.0
      %v1155 = vadd.f32 %v1143, 1.0
      %v1156 = vadd.f32 %v1145, 1.0
      %v1157 = vadd.f32 %v1147, 1.0
      %v1158 = vadd.f32 %v1149, 1.0
      %v1159 = vadd.f32 %v1151, 1.0
      %v1160 = vrcp.pop %v1152
      %v1161 = vmul.f32 %v1152, %v1160
      %v1162 = vsub.f32 1.0, %v1161
      %v1163 = vmul.f32 %v1160, %v1162
      %v1164 = vadd.f32 %v1160, %v1163
      %vm1165 = vweird.f32 %v1152
      %vm1166 = vweird.f32 %v1160
      %vm1167 = vmor %vm1165, %vm1166
      %v1168 = vsel %vm1167, %v1160, %v1164
      %v1169 = vand.u32 2147483647, %v1152
      %vm1170 = vcmp.eq.f32.partialorder %v1169, 8.507059e+37
      %v1171 = vand.u32 %v1152, 2147483648
      %v1172 = vor.u32 1.1754944e-38, %v1171
      %v1173 = vsel %vm1170, %v1172, %v1168
      %v1174 = vmul.f32 1.0, %v1173
      %v1175 = vrcp.pop %v1153
      %v1176 = vmul.f32 %v1153, %v1175
      %v1177 = vsub.f32 1.0, %v1176
      %v1178 = vmul.f32 %v1175, %v1177
      %v1179 = vadd.f32 %v1175, %v1178
      %vm1180 = vweird.f32 %v1153
      %vm1181 = vweird.f32 %v1175
      %vm1182 = vmor %vm1180, %vm1181
      %v1183 = vsel %vm1182, %v1175, %v1179
      %v1184 = vand.u32 2147483647, %v1153
      %vm1185 = vcmp.eq.f32.partialorder %v1184, 8.507059e+37
      %v1186 = vand.u32 %v1153, 2147483648
      %v1187 = vor.u32 1.1754944e-38, %v1186
      %v1188 = vsel %vm1185, %v1187, %v1183
      %v1189 = vmul.f32 1.0, %v1188
      %v1190 = vrcp.pop %v1154
      %v1191 = vmul.f32 %v1154, %v1190
      %v1192 = vsub.f32 1.0, %v1191
      %v1193 = vmul.f32 %v1190, %v1192
      %v1194 = vadd.f32 %v1190, %v1193
      %vm1195 = vweird.f32 %v1154
      %vm1196 = vweird.f32 %v1190
      %vm1197 = vmor %vm1195, %vm1196
      %v1198 = vsel %vm1197, %v1190, %v1194
      %v1199 = vand.u32 2147483647, %v1154
      %vm1200 = vcmp.eq.f32.partialorder %v1199, 8.507059e+37
      %v1201 = vand.u32 %v1154, 2147483648
      %v1202 = vor.u32 1.1754944e-38, %v1201
      %v1203 = vsel %vm1200, %v1202, %v1198
      %v1204 = vmul.f32 1.0, %v1203
      %v1205 = vrcp.pop %v1155
      %v1206 = vmul.f32 %v1155, %v1205
      %v1207 = vsub.f32 1.0, %v1206
      %v1208 = vmul.f32 %v1205, %v1207
      %v1209 = vadd.f32 %v1205, %v1208
      %vm1210 = vweird.f32 %v1155
      %vm1211 = vweird.f32 %v1205
      %vm1212 = vmor %vm1210, %vm1211
      %v1213 = vsel %vm1212, %v1205, %v1209
      %v1214 = vand.u32 2147483647, %v1155
      %vm1215 = vcmp.eq.f32.partialorder %v1214, 8.507059e+37
      %v1216 = vand.u32 %v1155, 2147483648
      %v1217 = vor.u32 1.1754944e-38, %v1216
      %v1218 = vsel %vm1215, %v1217, %v1213
      %v1219 = vmul.f32 1.0, %v1218
      %v1220 = vrcp.pop %v1156
      %v1221 = vmul.f32 %v1156, %v1220
      %v1222 = vsub.f32 1.0, %v1221
      %v1223 = vmul.f32 %v1220, %v1222
      %v1224 = vadd.f32 %v1220, %v1223
      %vm1225 = vweird.f32 %v1156
      %vm1226 = vweird.f32 %v1220
      %vm1227 = vmor %vm1225, %vm1226
      %v1228 = vsel %vm1227, %v1220, %v1224
      %v1229 = vand.u32 2147483647, %v1156
      %vm1230 = vcmp.eq.f32.partialorder %v1229, 8.507059e+37
      %v1231 = vand.u32 %v1156, 2147483648
      %v1232 = vor.u32 1.1754944e-38, %v1231
      %v1233 = vsel %vm1230, %v1232, %v1228
      %v1234 = vmul.f32 1.0, %v1233
      %v1235 = vrcp.pop %v1157
      %v1236 = vmul.f32 %v1157, %v1235
      %v1237 = vsub.f32 1.0, %v1236
      %v1238 = vmul.f32 %v1235, %v1237
      %v1239 = vadd.f32 %v1235, %v1238
      %vm1240 = vweird.f32 %v1157
      %vm1241 = vweird.f32 %v1235
      %vm1242 = vmor %vm1240, %vm1241
      %v1243 = vsel %vm1242, %v1235, %v1239
      %v1244 = vand.u32 2147483647, %v1157
      %vm1245 = vcmp.eq.f32.partialorder %v1244, 8.507059e+37
      %v1246 = vand.u32 %v1157, 2147483648
      %v1247 = vor.u32 1.1754944e-38, %v1246
      %v1248 = vsel %vm1245, %v1247, %v1243
      %v1249 = vmul.f32 1.0, %v1248
      %v1250 = vrcp.pop %v1158
      %v1251 = vmul.f32 %v1158, %v1250
      %v1252 = vsub.f32 1.0, %v1251
      %v1253 = vmul.f32 %v1250, %v1252
      %v1254 = vadd.f32 %v1250, %v1253
      %vm1255 = vweird.f32 %v1158
      %vm1256 = vweird.f32 %v1250
      %vm1257 = vmor %vm1255, %vm1256
      %v1258 = vsel %vm1257, %v1250, %v1254
      %v1259 = vand.u32 2147483647, %v1158
      %vm1260 = vcmp.eq.f32.partialorder %v1259, 8.507059e+37
      %v1261 = vand.u32 %v1158, 2147483648
      %v1262 = vor.u32 1.1754944e-38, %v1261
      %v1263 = vsel %vm1260, %v1262, %v1258
      %v1264 = vmul.f32 1.0, %v1263
      %v1265 = vrcp.pop %v1159
      %v1266 = vmul.f32 %v1159, %v1265
      %v1267 = vsub.f32 1.0, %v1266
      %v1268 = vmul.f32 %v1265, %v1267
      %v1269 = vadd.f32 %v1265, %v1268
      %vm1270 = vweird.f32 %v1159
      %vm1271 = vweird.f32 %v1265
      %vm1272 = vmor %vm1270, %vm1271
      %v1273 = vsel %vm1272, %v1265, %v1269
      %v1274 = vand.u32 2147483647, %v1159
      %vm1275 = vcmp.eq.f32.partialorder %v1274, 8.507059e+37
      %v1276 = vand.u32 %v1159, 2147483648
      %v1277 = vor.u32 1.1754944e-38, %v1276
      %v1278 = vsel %vm1275, %v1277, %v1273
      %v1279 = vmul.f32 1.0, %v1278
      %v1280 = vmul.f32 %v754, %v1174
      %v1281 = vmul.f32 %v843, %v1189
      %v1282 = vmul.f32 %v756, %v1204
      %v1283 = vmul.f32 %v845, %v1219
      %v1284 = vmul.f32 %v759, %v1234
      %v1285 = vmul.f32 %v848, %v1249
      %v1286 = vmul.f32 %v761, %v1264
      %v1287 = vmul.f32 %v850, %v1279
      %v1288 = vadd.f32 %v1104, %v1280
      %v1289 = vadd.f32 %v1105, %v1281
      %v1290 = vadd.f32 %v1106, %v1282
      %v1291 = vadd.f32 %v1107, %v1283
      %v1292 = vadd.f32 %v1108, %v1284
      %v1293 = vadd.f32 %v1109, %v1285
      %v1294 = vadd.f32 %v1110, %v1286
      %v1295 = vadd.f32 %v1111, %v1287
      %v1296 = vadd.f32 %v998, %v1174
      %v1297 = vadd.f32 %v1013, %v1189
      %v1298 = vadd.f32 %v1028, %v1204
      %v1299 = vadd.f32 %v1043, %v1219
      %v1300 = vadd.f32 %v1058, %v1234
      %v1301 = vadd.f32 %v1073, %v1249
      %v1302 = vadd.f32 %v1088, %v1264
      %v1303 = vadd.f32 %v1103, %v1279
      %v1304 = vsub.f32 %v456, %v804
      %v1305 = vsub.f32 %v495, %v893
      %v1306 = vsub.f32 %v458, %v806
      %v1307 = vsub.f32 %v497, %v895
      %v1308 = vsub.f32 %v461, %v809
      %v1309 = vsub.f32 %v500, %v898
      %v1310 = vsub.f32 %v463, %v811
      %v1311 = vsub.f32 %v502, %v900
      %v1312 = vadd.f32 %v1304, %v927
      %v1313 = vadd.f32 %v1305, %v927
      %v1314 = vadd.f32 %v1306, %v932
      %v1315 = vadd.f32 %v1307, %v932
      %v1316 = vadd.f32 %v1308, %v937
      %v1317 = vadd.f32 %v1309, %v937
      %v1318 = vadd.f32 %v1310, %v942
      %v1319 = vadd.f32 %v1311, %v942
      %v1320 = vxor.u32 %v1312, 2147483648
      %v1321 = vxor.u32 %v1313, 2147483648
      %v1322 = vxor.u32 %v1314, 2147483648
      %v1323 = vxor.u32 %v1315, 2147483648
      %v1324 = vxor.u32 %v1316, 2147483648
      %v1325 = vxor.u32 %v1317, 2147483648
      %v1326 = vxor.u32 %v1318, 2147483648
      %v1327 = vxor.u32 %v1319, 2147483648
      %v1328 = vmul.f32 %v1320, 1.442695
      %v1329 = vpow.pop %v1328
      %v1330 = vmul.f32 %v1321, 1.442695
      %v1331 = vpow.pop %v1330
      %v1332 = vmul.f32 %v1322, 1.442695
      %v1333 = vpow.pop %v1332
      %v1334 = vmul.f32 %v1323, 1.442695
      %v1335 = vpow.pop %v1334
      %v1336 = vmul.f32 %v1324, 1.442695
      %v1337 = vpow.pop %v1336
      %v1338 = vmul.f32 %v1325, 1.442695
      %v1339 = vpow.pop %v1338
      %v1340 = vmul.f32 %v1326, 1.442695
      %v1341 = vpow.pop %v1340
      %v1342 = vmul.f32 %v1327, 1.442695
      %v1343 = vpow.pop %v1342
      %v1344 = vadd.f32 %v1329, 1.0
      %v1345 = vadd.f32 %v1331, 1.0
      %v1346 = vadd.f32 %v1333, 1.0
      %v1347 = vadd.f32 %v1335, 1.0
      %v1348 = vadd.f32 %v1337, 1.0
      %v1349 = vadd.f32 %v1339, 1.0
      %v1350 = vadd.f32 %v1341, 1.0
      %v1351 = vadd.f32 %v1343, 1.0
      %v1352 = vrcp.pop %v1344
      %v1353 = vmul.f32 %v1344, %v1352
      %v1354 = vsub.f32 1.0, %v1353
      %v1355 = vmul.f32 %v1352, %v1354
      %v1356 = vadd.f32 %v1352, %v1355
      %vm1357 = vweird.f32 %v1344
      %vm1358 = vweird.f32 %v1352
      %vm1359 = vmor %vm1357, %vm1358
      %v1360 = vsel %vm1359, %v1352, %v1356
      %v1361 = vand.u32 2147483647, %v1344
      %vm1362 = vcmp.eq.f32.partialorder %v1361, 8.507059e+37
      %v1363 = vand.u32 %v1344, 2147483648
      %v1364 = vor.u32 1.1754944e-38, %v1363
      %v1365 = vsel %vm1362, %v1364, %v1360
      %v1366 = vmul.f32 1.0, %v1365
      %v1367 = vrcp.pop %v1345
      %v1368 = vmul.f32 %v1345, %v1367
      %v1369 = vsub.f32 1.0, %v1368
      %v1370 = vmul.f32 %v1367, %v1369
      %v1371 = vadd.f32 %v1367, %v1370
      %vm1372 = vweird.f32 %v1345
      %vm1373 = vweird.f32 %v1367
      %vm1374 = vmor %vm1372, %vm1373
      %v1375 = vsel %vm1374, %v1367, %v1371
      %v1376 = vand.u32 2147483647, %v1345
      %vm1377 = vcmp.eq.f32.partialorder %v1376, 8.507059e+37
      %v1378 = vand.u32 %v1345, 2147483648
      %v1379 = vor.u32 1.1754944e-38, %v1378
      %v1380 = vsel %vm1377, %v1379, %v1375
      %v1381 = vmul.f32 1.0, %v1380
      %v1382 = vrcp.pop %v1346
      %v1383 = vmul.f32 %v1346, %v1382
      %v1384 = vsub.f32 1.0, %v1383
      %v1385 = vmul.f32 %v1382, %v1384
      %v1386 = vadd.f32 %v1382, %v1385
      %vm1387 = vweird.f32 %v1346
      %vm1388 = vweird.f32 %v1382
      %vm1389 = vmor %vm1387, %vm1388
      %v1390 = vsel %vm1389, %v1382, %v1386
      %v1391 = vand.u32 2147483647, %v1346
      %vm1392 = vcmp.eq.f32.partialorder %v1391, 8.507059e+37
      %v1393 = vand.u32 %v1346, 2147483648
      %v1394 = vor.u32 1.1754944e-38, %v1393
      %v1395 = vsel %vm1392, %v1394, %v1390
      %v1396 = vmul.f32 1.0, %v1395
      %v1397 = vrcp.pop %v1347
      %v1398 = vmul.f32 %v1347, %v1397
      %v1399 = vsub.f32 1.0, %v1398
      %v1400 = vmul.f32 %v1397, %v1399
      %v1401 = vadd.f32 %v1397, %v1400
      %vm1402 = vweird.f32 %v1347
      %vm1403 = vweird.f32 %v1397
      %vm1404 = vmor %vm1402, %vm1403
      %v1405 = vsel %vm1404, %v1397, %v1401
      %v1406 = vand.u32 2147483647, %v1347
      %vm1407 = vcmp.eq.f32.partialorder %v1406, 8.507059e+37
      %v1408 = vand.u32 %v1347, 2147483648
      %v1409 = vor.u32 1.1754944e-38, %v1408
      %v1410 = vsel %vm1407, %v1409, %v1405
      %v1411 = vmul.f32 1.0, %v1410
      %v1412 = vrcp.pop %v1348
      %v1413 = vmul.f32 %v1348, %v1412
      %v1414 = vsub.f32 1.0, %v1413
      %v1415 = vmul.f32 %v1412, %v1414
      %v1416 = vadd.f32 %v1412, %v1415
      %vm1417 = vweird.f32 %v1348
      %vm1418 = vweird.f32 %v1412
      %vm1419 = vmor %vm1417, %vm1418
      %v1420 = vsel %vm1419, %v1412, %v1416
      %v1421 = vand.u32 2147483647, %v1348
      %vm1422 = vcmp.eq.f32.partialorder %v1421, 8.507059e+37
      %v1423 = vand.u32 %v1348, 2147483648
      %v1424 = vor.u32 1.1754944e-38, %v1423
      %v1425 = vsel %vm1422, %v1424, %v1420
      %v1426 = vmul.f32 1.0, %v1425
      %v1427 = vrcp.pop %v1349
      %v1428 = vmul.f32 %v1349, %v1427
      %v1429 = vsub.f32 1.0, %v1428
      %v1430 = vmul.f32 %v1427, %v1429
      %v1431 = vadd.f32 %v1427, %v1430
      %vm1432 = vweird.f32 %v1349
      %vm1433 = vweird.f32 %v1427
      %vm1434 = vmor %vm1432, %vm1433
      %v1435 = vsel %vm1434, %v1427, %v1431
      %v1436 = vand.u32 2147483647, %v1349
      %vm1437 = vcmp.eq.f32.partialorder %v1436, 8.507059e+37
      %v1438 = vand.u32 %v1349, 2147483648
      %v1439 = vor.u32 1.1754944e-38, %v1438
      %v1440 = vsel %vm1437, %v1439, %v1435
      %v1441 = vmul.f32 1.0, %v1440
      %v1442 = vrcp.pop %v1350
      %v1443 = vmul.f32 %v1350, %v1442
      %v1444 = vsub.f32 1.0, %v1443
      %v1445 = vmul.f32 %v1442, %v1444
      %v1446 = vadd.f32 %v1442, %v1445
      %vm1447 = vweird.f32 %v1350
      %vm1448 = vweird.f32 %v1442
      %vm1449 = vmor %vm1447, %vm1448
      %v1450 = vsel %vm1449, %v1442, %v1446
      %v1451 = vand.u32 2147483647, %v1350
      %vm1452 = vcmp.eq.f32.partialorder %v1451, 8.507059e+37
      %v1453 = vand.u32 %v1350, 2147483648
      %v1454 = vor.u32 1.1754944e-38, %v1453
      %v1455 = vsel %vm1452, %v1454, %v1450
      %v1456 = vmul.f32 1.0, %v1455
      %v1457 = vrcp.pop %v1351
      %v1458 = vmul.f32 %v1351, %v1457
      %v1459 = vsub.f32 1.0, %v1458
      %v1460 = vmul.f32 %v1457, %v1459
      %v1461 = vadd.f32 %v1457, %v1460
      %vm1462 = vweird.f32 %v1351
      %vm1463 = vweird.f32 %v1457
      %vm1464 = vmor %vm1462, %vm1463
      %v1465 = vsel %vm1464, %v1457, %v1461
      %v1466 = vand.u32 2147483647, %v1351
      %vm1467 = vcmp.eq.f32.partialorder %v1466, 8.507059e+37
      %v1468 = vand.u32 %v1351, 2147483648
      %v1469 = vor.u32 1.1754944e-38, %v1468
      %v1470 = vsel %vm1467, %v1469, %v1465
      %v1471 = vmul.f32 1.0, %v1470
      %v1472 = vmul.f32 %v764, %v1366
      %v1473 = vmul.f32 %v853, %v1381
      %v1474 = vmul.f32 %v766, %v1396
      %v1475 = vmul.f32 %v855, %v1411
      %v1476 = vmul.f32 %v769, %v1426
      %v1477 = vmul.f32 %v858, %v1441
      %v1478 = vmul.f32 %v771, %v1456
      %v1479 = vmul.f32 %v860, %v1471
      %v1480 = vadd.f32 %v1288, %v1472
      %v1481 = vadd.f32 %v1289, %v1473
      %v1482 = vadd.f32 %v1290, %v1474
      %v1483 = vadd.f32 %v1291, %v1475
      %v1484 = vadd.f32 %v1292, %v1476
      %v1485 = vadd.f32 %v1293, %v1477
      %v1486 = vadd.f32 %v1294, %v1478
      %v1487 = vadd.f32 %v1295, %v1479
      %v1488 = vadd.f32 %v1296, %v1366
      %v1489 = vadd.f32 %v1297, %v1381
      %v1490 = vadd.f32 %v1298, %v1396
      %v1491 = vadd.f32 %v1299, %v1411
      %v1492 = vadd.f32 %v1300, %v1426
      %v1493 = vadd.f32 %v1301, %v1441
      %v1494 = vadd.f32 %v1302, %v1456
      %v1495 = vadd.f32 %v1303, %v1471
      %v1496 = vsub.f32 %v456, %v814
      %v1497 = vsub.f32 %v495, %v903
      %v1498 = vsub.f32 %v458, %v816
      %v1499 = vsub.f32 %v497, %v905
      %v1500 = vsub.f32 %v461, %v819
      %v1501 = vsub.f32 %v500, %v908
      %v1502 = vsub.f32 %v463, %v821
      %v1503 = vsub.f32 %v502, %v910
      %v1504 = vadd.f32 %v1496, %v927
      %v1505 = vadd.f32 %v1497, %v927
      %v1506 = vadd.f32 %v1498, %v932
      %v1507 = vadd.f32 %v1499, %v932
      %v1508 = vadd.f32 %v1500, %v937
      %v1509 = vadd.f32 %v1501, %v937
      %v1510 = vadd.f32 %v1502, %v942
      %v1511 = vadd.f32 %v1503, %v942
      %v1512 = vxor.u32 %v1504, 2147483648
      %v1513 = vxor.u32 %v1505, 2147483648
      %v1514 = vxor.u32 %v1506, 2147483648
      %v1515 = vxor.u32 %v1507, 2147483648
      %v1516 = vxor.u32 %v1508, 2147483648
      %v1517 = vxor.u32 %v1509, 2147483648
      %v1518 = vxor.u32 %v1510, 2147483648
      %v1519 = vxor.u32 %v1511, 2147483648
      %v1520 = vmul.f32 %v1512, 1.442695
      %v1521 = vpow.pop %v1520
      %v1522 = vmul.f32 %v1513, 1.442695
      %v1523 = vpow.pop %v1522
      %v1524 = vmul.f32 %v1514, 1.442695
      %v1525 = vpow.pop %v1524
      %v1526 = vmul.f32 %v1515, 1.442695
      %v1527 = vpow.pop %v1526
      %v1528 = vmul.f32 %v1516, 1.442695
      %v1529 = vpow.pop %v1528
      %v1530 = vmul.f32 %v1517, 1.442695
      %v1531 = vpow.pop %v1530
      %v1532 = vmul.f32 %v1518, 1.442695
      %v1533 = vpow.pop %v1532
      %v1534 = vmul.f32 %v1519, 1.442695
      %v1535 = vpow.pop %v1534
      %v1536 = vadd.f32 %v1521, 1.0
      %v1537 = vadd.f32 %v1523, 1.0
      %v1538 = vadd.f32 %v1525, 1.0
      %v1539 = vadd.f32 %v1527, 1.0
      %v1540 = vadd.f32 %v1529, 1.0
      %v1541 = vadd.f32 %v1531, 1.0
      %v1542 = vadd.f32 %v1533, 1.0
      %v1543 = vadd.f32 %v1535, 1.0
      %v1544 = vrcp.pop %v1536
      %v1545 = vmul.f32 %v1536, %v1544
      %v1546 = vsub.f32 1.0, %v1545
      %v1547 = vmul.f32 %v1544, %v1546
      %v1548 = vadd.f32 %v1544, %v1547
      %vm1549 = vweird.f32 %v1536
      %vm1550 = vweird.f32 %v1544
      %vm1551 = vmor %vm1549, %vm1550
      %v1552 = vsel %vm1551, %v1544, %v1548
      %v1553 = vand.u32 2147483647, %v1536
      %vm1554 = vcmp.eq.f32.partialorder %v1553, 8.507059e+37
      %v1555 = vand.u32 %v1536, 2147483648
      %v1556 = vor.u32 1.1754944e-38, %v1555
      %v1557 = vsel %vm1554, %v1556, %v1552
      %v1558 = vmul.f32 1.0, %v1557
      %v1559 = vrcp.pop %v1537
      %v1560 = vmul.f32 %v1537, %v1559
      %v1561 = vsub.f32 1.0, %v1560
      %v1562 = vmul.f32 %v1559, %v1561
      %v1563 = vadd.f32 %v1559, %v1562
      %vm1564 = vweird.f32 %v1537
      %vm1565 = vweird.f32 %v1559
      %vm1566 = vmor %vm1564, %vm1565
      %v1567 = vsel %vm1566, %v1559, %v1563
      %v1568 = vand.u32 2147483647, %v1537
      %vm1569 = vcmp.eq.f32.partialorder %v1568, 8.507059e+37
      %v1570 = vand.u32 %v1537, 2147483648
      %v1571 = vor.u32 1.1754944e-38, %v1570
      %v1572 = vsel %vm1569, %v1571, %v1567
      %v1573 = vmul.f32 1.0, %v1572
      %v1574 = vrcp.pop %v1538
      %v1575 = vmul.f32 %v1538, %v1574
      %v1576 = vsub.f32 1.0, %v1575
      %v1577 = vmul.f32 %v1574, %v1576
      %v1578 = vadd.f32 %v1574, %v1577
      %vm1579 = vweird.f32 %v1538
      %vm1580 = vweird.f32 %v1574
      %vm1581 = vmor %vm1579, %vm1580
      %v1582 = vsel %vm1581, %v1574, %v1578
      %v1583 = vand.u32 2147483647, %v1538
      %vm1584 = vcmp.eq.f32.partialorder %v1583, 8.507059e+37
      %v1585 = vand.u32 %v1538, 2147483648
      %v1586 = vor.u32 1.1754944e-38, %v1585
      %v1587 = vsel %vm1584, %v1586, %v1582
      %v1588 = vmul.f32 1.0, %v1587
      %v1589 = vrcp.pop %v1539
      %v1590 = vmul.f32 %v1539, %v1589
      %v1591 = vsub.f32 1.0, %v1590
      %v1592 = vmul.f32 %v1589, %v1591
      %v1593 = vadd.f32 %v1589, %v1592
      %vm1594 = vweird.f32 %v1539
      %vm1595 = vweird.f32 %v1589
      %vm1596 = vmor %vm1594, %vm1595
      %v1597 = vsel %vm1596, %v1589, %v1593
      %v1598 = vand.u32 2147483647, %v1539
      %vm1599 = vcmp.eq.f32.partialorder %v1598, 8.507059e+37
      %v1600 = vand.u32 %v1539, 2147483648
      %v1601 = vor.u32 1.1754944e-38, %v1600
      %v1602 = vsel %vm1599, %v1601, %v1597
      %v1603 = vmul.f32 1.0, %v1602
      %v1604 = vrcp.pop %v1540
      %v1605 = vmul.f32 %v1540, %v1604
      %v1606 = vsub.f32 1.0, %v1605
      %v1607 = vmul.f32 %v1604, %v1606
      %v1608 = vadd.f32 %v1604, %v1607
      %vm1609 = vweird.f32 %v1540
      %vm1610 = vweird.f32 %v1604
      %vm1611 = vmor %vm1609, %vm1610
      %v1612 = vsel %vm1611, %v1604, %v1608
      %v1613 = vand.u32 2147483647, %v1540
      %vm1614 = vcmp.eq.f32.partialorder %v1613, 8.507059e+37
      %v1615 = vand.u32 %v1540, 2147483648
      %v1616 = vor.u32 1.1754944e-38, %v1615
      %v1617 = vsel %vm1614, %v1616, %v1612
      %v1618 = vmul.f32 1.0, %v1617
      %v1619 = vrcp.pop %v1541
      %v1620 = vmul.f32 %v1541, %v1619
      %v1621 = vsub.f32 1.0, %v1620
      %v1622 = vmul.f32 %v1619, %v1621
      %v1623 = vadd.f32 %v1619, %v1622
      %vm1624 = vweird.f32 %v1541
      %vm1625 = vweird.f32 %v1619
      %vm1626 = vmor %vm1624, %vm1625
      %v1627 = vsel %vm1626, %v1619, %v1623
      %v1628 = vand.u32 2147483647, %v1541
      %vm1629 = vcmp.eq.f32.partialorder %v1628, 8.507059e+37
      %v1630 = vand.u32 %v1541, 2147483648
      %v1631 = vor.u32 1.1754944e-38, %v1630
      %v1632 = vsel %vm1629, %v1631, %v1627
      %v1633 = vmul.f32 1.0, %v1632
      %v1634 = vrcp.pop %v1542
      %v1635 = vmul.f32 %v1542, %v1634
      %v1636 = vsub.f32 1.0, %v1635
      %v1637 = vmul.f32 %v1634, %v1636
      %v1638 = vadd.f32 %v1634, %v1637
      %vm1639 = vweird.f32 %v1542
      %vm1640 = vweird.f32 %v1634
      %vm1641 = vmor %vm1639, %vm1640
      %v1642 = vsel %vm1641, %v1634, %v1638
      %v1643 = vand.u32 2147483647, %v1542
      %vm1644 = vcmp.eq.f32.partialorder %v1643, 8.507059e+37
      %v1645 = vand.u32 %v1542, 2147483648
      %v1646 = vor.u32 1.1754944e-38, %v1645
      %v1647 = vsel %vm1644, %v1646, %v1642
      %v1648 = vmul.f32 1.0, %v1647
      %v1649 = vrcp.pop %v1543
      %v1650 = vmul.f32 %v1543, %v1649
      %v1651 = vsub.f32 1.0, %v1650
      %v1652 = vmul.f32 %v1649, %v1651
      %v1653 = vadd.f32 %v1649, %v1652
      %vm1654 = vweird.f32 %v1543
      %vm1655 = vweird.f32 %v1649
      %vm1656 = vmor %vm1654, %vm1655
      %v1657 = vsel %vm1656, %v1649, %v1653
      %v1658 = vand.u32 2147483647, %v1543
      %vm1659 = vcmp.eq.f32.partialorder %v1658, 8.507059e+37
      %v1660 = vand.u32 %v1543, 2147483648
      %v1661 = vor.u32 1.1754944e-38, %v1660
      %v1662 = vsel %vm1659, %v1661, %v1657
      %v1663 = vmul.f32 1.0, %v1662
      %v1664 = vmul.f32 %v774, %v1558
      %v1665 = vmul.f32 %v863, %v1573
      %v1666 = vmul.f32 %v776, %v1588
      %v1667 = vmul.f32 %v865, %v1603
      %v1668 = vmul.f32 %v779, %v1618
      %v1669 = vmul.f32 %v868, %v1633
      %v1670 = vmul.f32 %v781, %v1648
      %v1671 = vmul.f32 %v870, %v1663
      %v1672 = vadd.f32 %v1480, %v1664
      %v1673 = vadd.f32 %v1481, %v1665
      %v1674 = vadd.f32 %v1482, %v1666
      %v1675 = vadd.f32 %v1483, %v1667
      %v1676 = vadd.f32 %v1484, %v1668
      %v1677 = vadd.f32 %v1485, %v1669
      %v1678 = vadd.f32 %v1486, %v1670
      %v1679 = vadd.f32 %v1487, %v1671
      %v1680 = vadd.f32 %v1488, %v1558
      %v1681 = vadd.f32 %v1489, %v1573
      %v1682 = vadd.f32 %v1490, %v1588
      %v1683 = vadd.f32 %v1491, %v1603
      %v1684 = vadd.f32 %v1492, %v1618
      %v1685 = vadd.f32 %v1493, %v1633
      %v1686 = vadd.f32 %v1494, %v1648
      %v1687 = vadd.f32 %v1495, %v1663
      %v1688 = vmax.f32 %v1680, 1e-20
      %v1689 = vmax.f32 %v1681, 1e-20
      %v1690 = vmax.f32 %v1682, 1e-20
      %v1691 = vmax.f32 %v1683, 1e-20
      %v1692 = vmax.f32 %v1684, 1e-20
      %v1693 = vmax.f32 %v1685, 1e-20
      %v1694 = vmax.f32 %v1686, 1e-20
      %v1695 = vmax.f32 %v1687, 1e-20
      %v1696 = vrcp.pop %v1688
      %v1697 = vrcp.pop %v1689
      %v1698 = vrcp.pop %v1690
      %v1699 = vrcp.pop %v1691
      %v1700 = vrcp.pop %v1692
      %v1701 = vrcp.pop %v1693
      %v1702 = vrcp.pop %v1694
      %v1703 = vrcp.pop %v1695
      %v1704 = vmul.f32 %v1672, %v1696
      %v1705 = vmul.f32 %v1673, %v1697
      %v1706 = vmul.f32 %v1674, %v1698
      %v1707 = vmul.f32 %v1675, %v1699
      %v1708 = vmul.f32 %v1676, %v1700
      %v1709 = vmul.f32 %v1677, %v1701
      %v1710 = vmul.f32 %v1678, %v1702
      %v1711 = vmul.f32 %v1679, %v1703
      %v1712 = vld [vmem:[%s5] sm:$0xf]
      %v1713 = vld [vmem:[%s5 + $0x4] sm:$0xf]
      %v1714 = vld [vmem:[%s5 + $0x8] sm:$0xf]
      %v1715 = vld [vmem:[%s5 + $0xc] sm:$0xf]
      %v1716 = vld [vmem:[%s5 + $0x10] sm:$0xf]
      %v1717 = vld [vmem:[%s5 + $0x14] sm:$0xf]
      %v1718 = vld [vmem:[%s5 + $0x18] sm:$0xf]
      %v1719 = vld [vmem:[%s5 + $0x1c] sm:$0xf]
      %v1720 = vpack.c.bf16 %v1706, %v1704
      %v1721 = vpack.c.bf16 %v1707, %v1705
      %v1722 = vpack.c.bf16 %v1710, %v1708
      %v1723 = vpack.c.bf16 %v1711, %v1709
      %v1732 = vunpack.c.l.b16 %v1712
      %v1733 = vunpack.c.l.b16 %v1713
      %v1734 = vunpack.c.l.b16 %v1714
      %v1735 = vunpack.c.l.b16 %v1715
      %v1736 = vunpack.c.l.b16 %v1716
      %v1737 = vunpack.c.l.b16 %v1717
      %v1738 = vunpack.c.l.b16 %v1718
      %v1739 = vunpack.c.l.b16 %v1719
      %v1740 = vpack.c.b16 %v1733, %v1732
      %v1741 = vpack.c.b16 %v1735, %v1734
      %v1742 = vpack.c.b16 %v1737, %v1736
      %v1743 = vpack.c.b16 %v1739, %v1738
      %v1745 = vsel %vm427, %v1740, 0
      %v1748 = vsel %vm427, %v1741, 0
      %v1751 = vsel %vm427, %v1742, 0
      %v1754 = vsel %vm427, %v1743, 0
      %1756 = vmatpush.bf16.msra.mxu0 0
      %1757 = vmatpush.bf16.msra.mxu0 0
      %1758 = vmatpush.bf16.msra.mxu0 0
      %1759 = vmatpush.bf16.msra.mxu0 0
      %1760 = vmatpush.bf16.msra.mxu0 0
      %1761 = vmatpush.bf16.msra.mxu0 0
      %1762 = vmatpush.bf16.msra.mxu0 %v1722
      %1763 = vmatpush.bf16.msra.mxu0 %v1720
      %1764 = vmatmul.bf16.gmra.mxu0 %v1745
      %v1765 = vpop.f32.mrf.mxu0
      %v1766 = vadd.f32 %v466, %v1765
      %v1767 = vpop.f32.mrf.mxu0
      %v1768 = vadd.f32 %v468, %v1767
      %1769 = vmatmul.bf16.gmra.mxu0 %v1748
      %v1770 = vpop.f32.mrf.mxu0
      %v1771 = vadd.f32 %v471, %v1770
      %v1772 = vpop.f32.mrf.mxu0
      %v1773 = vadd.f32 %v473, %v1772
      %1774 = vmatmul.bf16.gmra.mxu0 %v1751
      %v1775 = vpop.f32.mrf.mxu0
      %v1776 = vadd.f32 %v476, %v1775
      %v1777 = vpop.f32.mrf.mxu0
      %v1778 = vadd.f32 %v478, %v1777
      %1779 = vmatmul.bf16.gmra.mxu0 %v1754
      %v1780 = vpop.f32.mrf.mxu0
      %v1781 = vadd.f32 %v481, %v1780
      %v1782 = vpop.f32.mrf.mxu0
      %v1783 = vadd.f32 %v483, %v1782
      %1784 = vdwg.mxu0
      %1785 = vmatpush.bf16.msra.mxu0 0
      %1786 = vmatpush.bf16.msra.mxu0 0
      %1787 = vmatpush.bf16.msra.mxu0 0
      %1788 = vmatpush.bf16.msra.mxu0 0
      %1789 = vmatpush.bf16.msra.mxu0 0
      %1790 = vmatpush.bf16.msra.mxu0 0
      %1791 = vmatpush.bf16.msra.mxu0 %v1723
      %1792 = vmatpush.bf16.msra.mxu0 %v1721
      %1793 = vmatmul.bf16.gmra.mxu0 %v1745
      %v1794 = vpop.f32.mrf.mxu0
      %v1795 = vadd.f32 %v505, %v1794
      %v1796 = vpop.f32.mrf.mxu0
      %v1797 = vadd.f32 %v507, %v1796
      %1798 = vmatmul.bf16.gmra.mxu0 %v1748
      %v1799 = vpop.f32.mrf.mxu0
      %v1800 = vadd.f32 %v510, %v1799
      %v1801 = vpop.f32.mrf.mxu0
      %v1802 = vadd.f32 %v512, %v1801
      %1803 = vmatmul.bf16.gmra.mxu0 %v1751
      %v1804 = vpop.f32.mrf.mxu0
      %v1805 = vadd.f32 %v515, %v1804
      %v1806 = vpop.f32.mrf.mxu0
      %v1807 = vadd.f32 %v517, %v1806
      %1808 = vmatmul.bf16.gmra.mxu0 %v1754
      %v1809 = vpop.f32.mrf.mxu0
      %v1810 = vadd.f32 %v520, %v1809
      %v1811 = vpop.f32.mrf.mxu0
      %v1812 = vadd.f32 %v522, %v1811
      %1813 = vdwg.mxu0
      %v1814 = vld [vmem:[%s6] sm:$0xff]
      %v1815 = vld [vmem:[%s6 + $0x8] sm:$0xff]
      %v1816 = vld [vmem:[%s6 + $0x10] sm:$0xff]
      %v1817 = vld [vmem:[%s6 + $0x18] sm:$0xff]
      %v1818 = vld [vmem:[%s6 + $0x20] sm:$0xff]
      %v1819 = vld [vmem:[%s6 + $0x28] sm:$0xff]
      %v1820 = vld [vmem:[%s6 + $0x30] sm:$0xff]
      %v1821 = vld [vmem:[%s6 + $0x38] sm:$0xff]
      %1823 = vset.pattern.permute.xlu0 0
      %1824 = vperm.xlu0 %1823, %v1814
      %v1825 = vpop.permute.xlu0 %1824
      %1828 = vset.pattern.permute.xlu0 0
      %1829 = vperm.xlu0 %1828, %v1815
      %v1830 = vpop.permute.xlu0 %1829
      %1833 = vset.pattern.permute.xlu0 0
      %1834 = vperm.xlu0 %1833, %v1816
      %v1835 = vpop.permute.xlu0 %1834
      %1838 = vset.pattern.permute.xlu0 0
      %1839 = vperm.xlu0 %1838, %v1817
      %v1840 = vpop.permute.xlu0 %1839
      %1843 = vset.pattern.permute.xlu0 0
      %1844 = vperm.xlu0 %1843, %v1818
      %v1845 = vpop.permute.xlu0 %1844
      %1848 = vset.pattern.permute.xlu0 0
      %1849 = vperm.xlu0 %1848, %v1819
      %v1850 = vpop.permute.xlu0 %1849
      %1853 = vset.pattern.permute.xlu0 0
      %1854 = vperm.xlu0 %1853, %v1820
      %v1855 = vpop.permute.xlu0 %1854
      %1858 = vset.pattern.permute.xlu0 0
      %1859 = vperm.xlu0 %1858, %v1821
      %v1860 = vpop.permute.xlu0 %1859
      %v1862 = vadd.f32 %v1766, %v1825
      %v1863 = vadd.f32 %v1795, %v1825
      %v1864 = vadd.f32 %v1768, %v1830
      %v1865 = vadd.f32 %v1797, %v1830
      %v1866 = vadd.f32 %v1771, %v1835
      %v1867 = vadd.f32 %v1800, %v1835
      %v1868 = vadd.f32 %v1773, %v1840
      %v1869 = vadd.f32 %v1802, %v1840
      %v1870 = vadd.f32 %v1776, %v1845
      %v1871 = vadd.f32 %v1805, %v1845
      %v1872 = vadd.f32 %v1778, %v1850
      %v1873 = vadd.f32 %v1807, %v1850
      %v1874 = vadd.f32 %v1781, %v1855
      %v1875 = vadd.f32 %v1810, %v1855
      %v1876 = vadd.f32 %v1783, %v1860
      %v1877 = vadd.f32 %v1812, %v1860
      %v1878 = vmax.f32 %v1862, 0.0
      %v1879 = vmax.f32 %v1863, 0.0
      %v1880 = vmax.f32 %v1864, 0.0
      %v1881 = vmax.f32 %v1865, 0.0
      %v1882 = vmax.f32 %v1866, 0.0
      %v1883 = vmax.f32 %v1867, 0.0
      %v1884 = vmax.f32 %v1868, 0.0
      %v1885 = vmax.f32 %v1869, 0.0
      %v1886 = vmax.f32 %v1870, 0.0
      %v1887 = vmax.f32 %v1871, 0.0
      %v1888 = vmax.f32 %v1872, 0.0
      %v1889 = vmax.f32 %v1873, 0.0
      %v1890 = vmax.f32 %v1874, 0.0
      %v1891 = vmax.f32 %v1875, 0.0
      %v1892 = vmax.f32 %v1876, 0.0
      %v1893 = vmax.f32 %v1877, 0.0
      %1894 = vst [vmem:[%s358] sm:$0xff] %v1878
      %1895 = vst [vmem:[%s358 + $0x8] sm:$0xff] %v1879
      %1896 = vst [vmem:[%s358 + $0x10] sm:$0xff] %v1880
      %1897 = vst [vmem:[%s358 + $0x18] sm:$0xff] %v1881
      %1898 = vst [vmem:[%s358 + $0x20] sm:$0xff] %v1882
      %1899 = vst [vmem:[%s358 + $0x28] sm:$0xff] %v1883
      %1900 = vst [vmem:[%s358 + $0x30] sm:$0xff] %v1884
      %1901 = vst [vmem:[%s358 + $0x38] sm:$0xff] %v1885
      %1902 = vst [vmem:[%s358 + $0x40] sm:$0xff] %v1886
      %1903 = vst [vmem:[%s358 + $0x48] sm:$0xff] %v1887
      %1904 = vst [vmem:[%s358 + $0x50] sm:$0xff] %v1888
      %1905 = vst [vmem:[%s358 + $0x58] sm:$0xff] %v1889
      %1906 = vst [vmem:[%s358 + $0x60] sm:$0xff] %v1890
      %1907 = vst [vmem:[%s358 + $0x68] sm:$0xff] %v1891
      %1908 = vst [vmem:[%s358 + $0x70] sm:$0xff] %v1892
      %1909 = vst [vmem:[%s358 + $0x78] sm:$0xff] %v1893
      %s1910 = smul.u32 2, %s22
      %p1911 = scmp.lt.s32.totalorder %s23, 1
      %s1912 = scalar_select %p1911, %s23, 1
      %p1913 = scmp.lt.s32.totalorder %s1910, 1
      %s1914 = scalar_select %p1913, %s1910, 1
      %s1915 = smul.addr %s1912, 16
      %s1916 = sadd.s32 %s1914, %s1915
      %s1917 = smul.addr %s1916, 8
      %s1918 = scalar_lea.vmem %s7, %s1917
      // Predicated region
      $region49: #{_lambda_.1} parent=47 // pred_check
        %p1919 = pneg %p214
      $region50: #{_lambda_.1} parent=47 // pred_check_branch
        %1921 = sbr.rel (%p1919) target = $region52
      $region51: #{_lambda_.1} parent=47 // pred_region
        %s1922 = smul.u32 2, %s22
      $region52: #{_lambda_.1} parent=47 // pred_fallthru
        _
    $region48: #{_lambda_.1} parent=5 // pred_fallthru
      _
    %p1923 = scmp.le.s32.totalorder 2, %s13
    // Predicated region
    $region53: #{_lambda_.1} parent=5 // pred_check
      %p1924 = pneg %p1923
    $region54: #{_lambda_.1} parent=5 // pred_check_branch
      %1926 = sbr.rel (%p1924) target = $region56
    $region55: #{_lambda_.1} parent=5 // pred_region
      %s1927 = ssub.s32 %s13, 2
      // Predicated region
      $region57: #{_lambda_.1} parent=55 // pred_check
        %p1928 = pneg %p220
      $region58: #{_lambda_.1} parent=55 // pred_check_branch
        %1930 = sbr.rel (%p1928) target = $region60
      $region59: #{_lambda_.1} parent=55 // pred_region
        %s1931 = smul.u32 2, %s24
        %p1932 = scmp.lt.s32.totalorder %s25, 1
        %s1933 = scalar_select %p1932, %s25, 1
        %p1934 = scmp.lt.s32.totalorder %s1931, 1
        %s1935 = scalar_select %p1934, %s1931, 1
        %s1936 = smul.addr %s1933, 16
        %s1937 = sadd.s32 %s1935, %s1936
        %s1938 = smul.addr %s1937, 8
        %s1939 = scalar_lea.vmem %s7, %s1938
      $region60: #{_lambda_.1} parent=55 // pred_fallthru
        _
    $region56: #{_lambda_.1} parent=5 // pred_fallthru
      _
  $region6: #{_lambda_.1} parent=0 // loop_footer
    %s17 = sadd.s32 1, %s13
  $region7: #{_lambda_.1} parent=0 // loop_footer_branch
    %12 = sbr.rel target = $region3
  $region8: #{_lambda_.1} parent=0 // loop_exit
    _

</llo_original>
